<compile_context>
chip_gen: v7x
topology: tpu7x:2x2x1
jax: 0.10.0
libtpu: 0.0.40
codegen_flags: <defaults>
</compile_context>

<pallas_src>
import math

import jax
import jax.numpy as jnp
from jax import lax
from jax.experimental import pallas as pl
from jax.experimental.pallas import tpu as pltpu
from jax.scipy.linalg import block_diag as _block_diag

# ---- problem sizes (small, consistent with the module) ----------------------
N = 2              # batch
SEQ_LEN = 8        # seq_len
EMBED = 32         # embed_size
HEADS = 4          # heads
HEAD_DIM = EMBED // HEADS      # 8 (== SEQ_LEN; the shared 8x8 block mask relies on this)
FWD_EXP = 4        # forward_expansion
NEG_SLOPE = 0.01   # nn.LeakyReLU default
EPS = 1e-5         # nn.BatchNorm1d default
SCALE = math.sqrt(float(EMBED))

W_TOT = N * EMBED              # 64  : packed lane width (batch x embed)
SEG = N * HEADS                # 8   : number of (batch, head) segments
HID = N * FWD_EXP * EMBED      # 256 : packed feed-forward hidden width

# ---- bf16 wide weight slab (width 256) row offsets ---------------------------
WB_SA_QKV = 0      # SA [Wq | Wk/sqrt(E) | Wv] block-diag   (64, 192)
WB_CA_QKV = 64     # CA [Wq | Wk/sqrt(E) | Wv] block-diag   (64, 192)
WB_FF1 = 128       # FFN W1 block-diag                      (64, 256)
WB_ROWS, WB_W = 192, 256

# ---- bf16 narrow weight slab (width 64) row offsets --------------------------
NB_SA_E = 0        # SA skew gather matrix                  (512, 64)
NB_CA_E = 512      # CA skew gather matrix                  (512, 64)
NB_FF2 = 1024      # FFN W2 block-diag                      (256, 64)
NB_SA_WO = 1280    # SA fc_out weight block-diag            (64, 64)
NB_CA_WO = 1344    # CA fc_out weight block-diag            (64, 64)
NB_ROWS, NB_W = 1408, 64

# ---- f32 wide constants slab (width 256) row offsets -------------------------
CB_SA_B = 0        # SA qkv bias, replicated to 8 rows      (8, 192)
CB_CA_B = 8        # CA qkv bias                            (8, 192)
CB_FF1_B = 16      # FFN b1                                 (8, 256)
CB_ROWS, CB_W = 24, 256

# ---- f32 narrow constants slab (width 64) row offsets ------------------------
CN_BLK = 0         # 0/1 (batch, head)-segment block mask   (64, 64)
CN_CAUSAL = 64     # additive -1e30 mask at k <= q          (8, 64)
CN_SA_BO = 72      # SA fc_out bias                         (8, 64)
CN_CA_BO = 80      # CA fc_out bias                         (8, 64)
CN_FF2_B = 88      # FFN b2                                 (8, 64)
CN_BN = 96         # 3x (gamma, beta), each (8, 64)         (48, 64)
CN_ROWS, CN_W = 144, 64


# -----------------------------------------------------------------------------
# the Pallas kernel: whole DecoderLayer forward on a (8, 64) lane-packed slab
# -----------------------------------------------------------------------------
def decoder_layer_kernel(x_ref, wb_ref, nb_ref, cb_ref, cn_ref, qsel_ref, out_ref):
    L, W = SEQ_LEN, W_TOT
    f32, bf16 = jnp.float32, jnp.bfloat16

    xc = x_ref[...]                                   # (8, 64) f32

    blk = cn_ref[CN_BLK:CN_BLK + W, :]                # (64, 64) 0/1 seg block-diag
    causal = cn_ref[CN_CAUSAL:CN_CAUSAL + L, :]       # (8, 64)  -1e30 where k <= q
    qsel = qsel_ref[...]                              # (8, 512) 0/1 row-block-diag

    def attention(xin, qkv_row, b_row, e_row, wo_row, bo_row):
        # fused Q,K,V for all (batch, head) pairs; K side carries 1/sqrt(E)
        qkv = (jnp.dot(xin.astype(bf16), wb_ref[qkv_row:qkv_row + W, 0:3 * W],
                       preferred_element_type=f32)
               + cb_ref[b_row:b_row + L, 0:3 * W])    # (8, 192) f32
        qc, kc, vc = qkv[:, 0:W], qkv[:, W:2 * W], qkv[:, 2 * W:3 * W]

        # fc_out folded into the V path (off the softmax critical path):
        # vw = Vbd @ Wo, so the post-softmax chain is a single matmul.
        vbd = jnp.tile(vc, (SEG, 1)) * blk            # (64, 64)
        vw = jnp.dot(vbd.astype(bf16), nb_ref[wo_row:wo_row + W, :],
                     preferred_element_type=f32)      # (64, 64)

        # per-(batch,head) scores; reference masks k <= q and keeps k > q
        kbd = jnp.tile(kc, (SEG, 1)) * blk            # (64, 64)
        scores = lax.dot_general(qc, kbd, (((1,), (1,)), ((), ())),
                                 preferred_element_type=f32)       # (8, 64)
        logits = scores + causal
        m = jnp.max(logits, axis=1, keepdims=True)    # per-row max (softmax-invariant)
        p = jnp.exp(logits - m)                       # masked lanes underflow to 0
        denom = jnp.dot(p, blk, preferred_element_type=f32)
        attn = p * pl.reciprocal(jnp.maximum(denom, 1e-30), approx=True)

        # relative-position skew: one matmul of the row-block-diagonal Q
        # against the precomputed gather matrix; added AFTER the softmax,
        # exactly as in the reference.
        qbd = jnp.tile(qc, (1, L)) * qsel             # (8, 512)
        skew = jnp.dot(qbd.astype(bf16), nb_ref[e_row:e_row + L * W, :],
                       preferred_element_type=f32)    # (8, 64)
        attn = attn + skew

        return (jnp.dot(attn, vw, preferred_element_type=f32)
                + cn_ref[bo_row:bo_row + L, :])

    def batchnorm(v, idx):
        # nn.BatchNorm1d(seq_len), training-mode batch stats (biased variance):
        # each row holds all (batch, embed) values of one sequence position.
        g = cn_ref[CN_BN + 16 * idx:CN_BN + 16 * idx + L, :]
        b = cn_ref[CN_BN + 16 * idx + L:CN_BN + 16 * idx + 2 * L, :]
        mean = jnp.sum(v, axis=1, keepdims=True) * (1.0 / W)
        d = v - mean
        var = jnp.sum(d * d, axis=1, keepdims=True) * (1.0 / W)
        return d * lax.rsqrt(var + EPS) * g + b

    # x = self_attention(x) + x ; x = norm1(x)
    x1 = batchnorm(attention(xc, WB_SA_QKV, CB_SA_B, NB_SA_E, NB_SA_WO, CN_SA_BO)
                   + xc, 0)
    # TODO(synk): reference `self.cross_attention(x, cross)` is a TypeError in
    # PyTorch (forward takes one tensor; the mask_flag ctor arg is also
    # missing), so as before we re-attend over x and ignore `cross`.
    x2 = batchnorm(attention(x1, WB_CA_QKV, CB_CA_B, NB_CA_E, NB_CA_WO, CN_CA_BO)
                   + x1, 1)

    # feed-forward (both batches at once via block-diagonal weights)
    h = (jnp.dot(x2.astype(bf16), wb_ref[WB_FF1:WB_FF1 + W, :],
                 preferred_element_type=f32)
         + cb_ref[CB_FF1_B:CB_FF1_B + L, 0:HID])      # (8, 256)
    h = jnp.where(h > 0, h, NEG_SLOPE * h)            # LeakyReLU
    y = (jnp.dot(h.astype(bf16), nb_ref[NB_FF2:NB_FF2 + HID, :],
                 preferred_element_type=f32)
         + cn_ref[CN_FF2_B:CN_FF2_B + L, :])          # (8, 64)

    out_ref[...] = batchnorm(y + x2, 2)               # (8, 64) direct store


# -----------------------------------------------------------------------------
# wrappers
# -----------------------------------------------------------------------------
def decoder_layer_packed(x_packed, wb, nb, cb, cn, qsel):
    """Operates on / returns the (SEQ_LEN, N*EMBED) lane-packed slab."""
    vmem = pl.BlockSpec(memory_space=pltpu.MemorySpace.VMEM)
    return pl.pallas_call(
        decoder_layer_kernel,
        out_shape=jax.ShapeDtypeStruct((SEQ_LEN, W_TOT), jnp.float32),
        in_specs=[vmem] * 6,
        out_specs=vmem,
    )(x_packed, wb, nb, cb, cn, qsel)


@jax.jit
def decoder_layer(x, cross, wb, nb, cb, cn, qsel):
    # TODO(synk): `cross` is unused (see kernel note) — kept for signature parity.
    del cross
    xp = jnp.transpose(x, (1, 0, 2)).reshape(SEQ_LEN, W_TOT)      # (8, 64)
    out = decoder_layer_packed(xp, wb, nb, cb, cn, qsel)
    return jnp.transpose(out.reshape(SEQ_LEN, N, EMBED), (1, 0, 2))  # (N, L, E)


# -----------------------------------------------------------------------------
# deterministic parameter construction + packing (wrapper-side glue)
# -----------------------------------------------------------------------------
def _normal(key, shape, scale=0.1):
    return scale * jax.random.normal(key, shape, dtype=jnp.float32)


def make_attention_raw(key):
    ks = jax.random.split(key, 9)
    return dict(
        wq=_normal(ks[0], (HEAD_DIM, HEAD_DIM)), bq=_normal(ks[1], (HEAD_DIM,)),
        wk=_normal(ks[2], (HEAD_DIM, HEAD_DIM)), bk=_normal(ks[3], (HEAD_DIM,)),
        wv=_normal(ks[4], (HEAD_DIM, HEAD_DIM)), bv=_normal(ks[5], (HEAD_DIM,)),
        E=jax.random.normal(ks[6], (1, SEQ_LEN, HEAD_DIM), dtype=jnp.float32),
        wo=_normal(ks[7], (EMBED, EMBED)), bo=_normal(ks[8], (EMBED,)))


def make_ffn_raw(key):
    ks = jax.random.split(key, 4)
    return dict(
        w1=_normal(ks[0], (FWD_EXP * EMBED, EMBED)), b1=_normal(ks[1], (FWD_EXP * EMBED,)),
        w2=_normal(ks[2], (EMBED, FWD_EXP * EMBED)), b2=_normal(ks[3], (EMBED,)))


def build_emat(e_table):
    """Gather matrix so the skew term is one matmul:
       Emat[q*SEG*D + seg*D + d, seg2*L + k] = (seg==seg2)*(k<=q)*E[L-1-q+k, d]
       and S = Qbd @ Emat with Qbd the row-block-diagonal expansion of Q."""
    L, D = SEQ_LEN, HEAD_DIM
    shape = (L, SEG, D, SEG, L)
    q = jnp.broadcast_to(jnp.arange(L).reshape(L, 1, 1, 1, 1), shape)
    seg = jnp.broadcast_to(jnp.arange(SEG).reshape(1, SEG, 1, 1, 1), shape)
    d = jnp.broadcast_to(jnp.arange(D).reshape(1, 1, D, 1, 1), shape)
    seg2 = jnp.broadcast_to(jnp.arange(SEG).reshape(1, 1, 1, SEG, 1), shape)
    k = jnp.broadcast_to(jnp.arange(L).reshape(1, 1, 1, 1, L), shape)
    valid = (seg == seg2) & (k <= q)
    eidx = jnp.clip(L - 1 - q + k, 0, L - 1)
    vals = jnp.where(valid, e_table[eidx, d], 0.0)
    return vals.reshape(L * SEG * D, SEG * L).astype(jnp.float32)


def attention_big_mats(p):
    def per_head(w_t):
        return _block_diag(*([w_t] * HEADS))

    def per_batch(m):
        return _block_diag(*([m] * N))

    wq_big = per_batch(per_head(p['wq'].T))
    wk_big = per_batch(per_head(p['wk'].T / SCALE))   # fold 1/sqrt(E) into K only
    wv_big = per_batch(per_head(p['wv'].T))
    wqkv = jnp.concatenate([wq_big, wk_big, wv_big], axis=1)          # (64, 192)
    bqkv = jnp.concatenate([jnp.tile(p['bq'], SEG),
                            jnp.tile(p['bk'] / SCALE, SEG),
                            jnp.tile(p['bv'], SEG)])                  # (192,)
    wo_big = per_batch(p['wo'].T)                                     # (64, 64)
    bo_big = jnp.tile(p['bo'], N)                                     # (64,)
    emat = build_emat(p['E'][0])                                      # (512, 64)
    return wqkv, bqkv, wo_big, bo_big, emat


def ffn_big_mats(p):
    w1_big = _block_diag(*([p['w1'].T] * N))                          # (64, 256)
    b1_big = jnp.tile(p['b1'], N)                                     # (256,)
    w2_big = _block_diag(*([p['w2'].T] * N))                          # (256, 64)
    b2_big = jnp.tile(p['b2'], N)                                     # (64,)
    return w1_big, b1_big, w2_big, b2_big


def _rep8(vec, width):
    row = jnp.zeros((width,), jnp.float32).at[:vec.shape[0]].set(vec)
    return jnp.tile(row[None, :], (SEQ_LEN, 1))


def pack_params(sa, ca, ff, bn_params):
    wb = jnp.zeros((WB_ROWS, WB_W), jnp.float32)
    nb = jnp.zeros((NB_ROWS, NB_W), jnp.float32)
    cb = jnp.zeros((CB_ROWS, CB_W), jnp.float32)
    cn = jnp.zeros((CN_ROWS, CN_W), jnp.float32)

    for qkv_row, b_row, e_row, wo_row, bo_row, p in (
            (WB_SA_QKV, CB_SA_B, NB_SA_E, NB_SA_WO, CN_SA_BO, sa),
            (WB_CA_QKV, CB_CA_B, NB_CA_E, NB_CA_WO, CN_CA_BO, ca)):
        wqkv, bqkv, wo_big, bo_big, emat = attention_big_mats(p)
        wb = wb.at[qkv_row:qkv_row + W_TOT, 0:3 * W_TOT].set(wqkv)
        cb = cb.at[b_row:b_row + SEQ_LEN, :].set(_rep8(bqkv, CB_W))
        nb = nb.at[e_row:e_row + SEQ_LEN * W_TOT, :].set(emat)
        nb = nb.at[wo_row:wo_row + W_TOT, :].set(wo_big)
        cn = cn.at[bo_row:bo_row + SEQ_LEN, :].set(_rep8(bo_big, CN_W))

    w1_big, b1_big, w2_big, b2_big = ffn_big_mats(ff)
    wb = wb.at[WB_FF1:WB_FF1 + W_TOT, :].set(w1_big)
    cb = cb.at[CB_FF1_B:CB_FF1_B + SEQ_LEN, :].set(_rep8(b1_big, CB_W))
    nb = nb.at[NB_FF2:NB_FF2 + HID, :].set(w2_big)
    cn = cn.at[CN_FF2_B:CN_FF2_B + SEQ_LEN, :].set(_rep8(b2_big, CN_W))

    # precomputed constant masks (replace in-kernel iota/compare/select chains)
    r = jnp.arange(W_TOT)
    blk = ((r[:, None] // SEQ_LEN) == (r[None, :] // SEQ_LEN)).astype(jnp.float32)
    cn = cn.at[CN_BLK:CN_BLK + W_TOT, :].set(blk)
    kcol = jnp.arange(W_TOT)[None, :] % SEQ_LEN
    qrow = jnp.arange(SEQ_LEN)[:, None]
    causal = jnp.where(kcol <= qrow, -1e30, 0.0).astype(jnp.float32)
    cn = cn.at[CN_CAUSAL:CN_CAUSAL + SEQ_LEN, :].set(causal)

    for i, (g, b) in enumerate(bn_params):
        cn = cn.at[CN_BN + 16 * i:CN_BN + 16 * i + SEQ_LEN, :].set(
            jnp.broadcast_to(g[:, None], (SEQ_LEN, CN_W)))
        cn = cn.at[CN_BN + 16 * i + SEQ_LEN:CN_BN + 16 * i + 2 * SEQ_LEN, :].set(
            jnp.broadcast_to(b[:, None], (SEQ_LEN, CN_W)))

    qsel = ((jnp.arange(SEQ_LEN * W_TOT)[None, :] // W_TOT)
            == jnp.arange(SEQ_LEN)[:, None]).astype(jnp.float32)      # (8, 512)

    return wb.astype(jnp.bfloat16), nb.astype(jnp.bfloat16), cb, cn, qsel


# -----------------------------------------------------------------------------
# pure-JAX reference (literal translation of the PyTorch forward)
# -----------------------------------------------------------------------------
def self_attention_ref(x, p):
    n, L, E = x.shape
    xh = x.reshape(n, L, HEADS, HEAD_DIM)
    v = xh @ p['wv'].T + p['bv']
    k = xh @ p['wk'].T + p['bk']
    q = xh @ p['wq'].T + p['bq']
    qe = jnp.einsum('nlhd,jd->nhlj', q, p['E'][0])
    i_idx = jnp.arange(L)[:, None]
    j_idx = jnp.arange(L)[None, :]
    qe = jnp.where(j_idx < (L - 1 - i_idx), 0.0, qe)          # _mask_positions
    padded = jnp.pad(qe, ((0, 0), (0, 0), (0, 0), (1, 0)))
    s = padded.reshape(n, HEADS, L + 1, L)[:, :, 1:, :]       # _skew
    qk = jnp.einsum('nqhd,nkhd->nhqk', q, k)
    keep = j_idx > i_idx                                      # triu(ones, 1) == 1
    qk = jnp.where(keep, qk, -1e20)
    attn = jax.nn.softmax(qk / SCALE, axis=3) + s
    z = jnp.einsum('nhqk,nkhd->nqhd', attn, v).reshape(n, L, E)
    return z @ p['wo'].T + p['bo']


def batchnorm_ref(x, gamma, beta):
    mean = jnp.mean(x, axis=(0, 2), keepdims=True)
    var = jnp.mean((x - mean) ** 2, axis=(0, 2), keepdims=True)
    return (x - mean) * lax.rsqrt(var + EPS) * gamma[None, :, None] + beta[None, :, None]


def decoder_layer_ref(x, cross, sa, ca, ff, bn_params):
    del cross   # see TODO(synk) in the kernel
    (g1, b1), (g2, b2), (g3, b3) = bn_params
    x1 = batchnorm_ref(self_attention_ref(x, sa) + x, g1, b1)
    x2 = batchnorm_ref(self_attention_ref(x1, ca) + x1, g2, b2)
    h = x2 @ ff['w1'].T + ff['b1']
    h = jnp.where(h > 0, h, NEG_SLOPE * h)
    y = h @ ff['w2'].T + ff['b2']
    return batchnorm_ref(y + x2, g3, b3)


if __name__ == "__main__":
    key = jax.random.PRNGKey(0)
    k_x, k_cross, k_sa, k_ca, k_ff = jax.random.split(key, 5)

    x = jax.random.normal(k_x, (N, SEQ_LEN, EMBED), dtype=jnp.float32)
    cross = jax.random.normal(k_cross, (N, SEQ_LEN, EMBED), dtype=jnp.float32)

    sa = make_attention_raw(k_sa)
    ca = make_attention_raw(k_ca)
    ff = make_ffn_raw(k_ff)
    gamma = jnp.ones((SEQ_LEN,), jnp.float32)   # nn.BatchNorm1d default affine
    beta = jnp.zeros((SEQ_LEN,), jnp.float32)
    bn_params = ((gamma, beta), (gamma, beta), (gamma, beta))

    wb, nb, cb, cn, qsel = pack_params(sa, ca, ff, bn_params)

    out = decoder_layer(x, cross, wb, nb, cb, cn, qsel)
    out = jax.block_until_ready(out)

    assert out.shape == (N, SEQ_LEN, EMBED)
    assert bool(jnp.all(jnp.isfinite(out)))

    # numerical check vs. a pure-JAX reference (bf16 weight slabs + approx
    # reciprocal => small deviations; a semantic error would be O(1)).
    ref = decoder_layer_ref(x, cross, sa, ca, ff, bn_params)
    err = float(jnp.max(jnp.abs(out - ref)))
    assert err < 0.25, f"max |kernel - reference| = {err}"

    print("KERNEL_OK")
</pallas_src>

<mosaic_0001>
module attributes {stable_mosaic.version = 11 : i64} {
  func.func @decoder_layer_kernel(%arg0: memref<8x64xf32, #tpu.memory_space<vmem>>, %arg1: memref<192x256xbf16, #tpu.memory_space<vmem>>, %arg2: memref<1408x64xbf16, #tpu.memory_space<vmem>>, %arg3: memref<24x256xf32, #tpu.memory_space<vmem>>, %arg4: memref<144x64xf32, #tpu.memory_space<vmem>>, %arg5: memref<8x512xf32, #tpu.memory_space<vmem>>, %arg6: memref<8x64xf32, #tpu.memory_space<vmem>>) attributes {dimension_semantics = [], scalar_prefetch = 0 : i64, scratch_operands = 0 : i64, tpu.core_type = #tpu.core_type<tc>} {
    %c0 = arith.constant 0 : index
    %c0_0 = arith.constant 0 : index
    %0 = vector.load %arg0[%c0, %c0_0] : memref<8x64xf32, #tpu.memory_space<vmem>>, vector<8x64xf32>
    %c0_1 = arith.constant 0 : index
    %c0_2 = arith.constant 0 : index
    %1 = vector.load %arg4[%c0_1, %c0_2] : memref<144x64xf32, #tpu.memory_space<vmem>>, vector<64x64xf32>
    %c64 = arith.constant 64 : index
    %c0_3 = arith.constant 0 : index
    %2 = vector.load %arg4[%c64, %c0_3] : memref<144x64xf32, #tpu.memory_space<vmem>>, vector<8x64xf32>
    %c0_4 = arith.constant 0 : index
    %c0_5 = arith.constant 0 : index
    %3 = vector.load %arg5[%c0_4, %c0_5] : memref<8x512xf32, #tpu.memory_space<vmem>>, vector<8x512xf32>
    %4 = arith.truncf %0 : vector<8x64xf32> to vector<8x64xbf16>
    %c0_6 = arith.constant 0 : index
    %c0_7 = arith.constant 0 : index
    %5 = vector.load %arg1[%c0_6, %c0_7] : memref<192x256xbf16, #tpu.memory_space<vmem>>, vector<64x192xbf16>
    %cst = arith.constant dense<0.000000e+00> : vector<8x192xf32>
    %6 = tpu.matmul %4, %5, %cst {dimension_numbers = #tpu.dot_dimension_numbers<[1], [0], [0], [1], [0, 0, 1, 1], [], []>} : vector<8x64xbf16>, vector<64x192xbf16>, vector<8x192xf32> -> vector<8x192xf32>
    %c0_8 = arith.constant 0 : index
    %c0_9 = arith.constant 0 : index
    %7 = vector.load %arg3[%c0_8, %c0_9] : memref<24x256xf32, #tpu.memory_space<vmem>>, vector<8x192xf32>
    %8 = arith.addf %6, %7 : vector<8x192xf32>
    %9 = vector.extract_strided_slice %8 {offsets = [0, 0], sizes = [8, 64], strides = [1, 1]} : vector<8x192xf32> to vector<8x64xf32>
    %10 = vector.extract_strided_slice %8 {offsets = [0, 64], sizes = [8, 64], strides = [1, 1]} : vector<8x192xf32> to vector<8x64xf32>
    %11 = vector.extract_strided_slice %8 {offsets = [0, 128], sizes = [8, 64], strides = [1, 1]} : vector<8x192xf32> to vector<8x64xf32>
    %12 = tpu.concatenate %11, %11, %11, %11, %11, %11, %11, %11 in 0 : vector<8x64xf32>, vector<8x64xf32>, vector<8x64xf32>, vector<8x64xf32>, vector<8x64xf32>, vector<8x64xf32>, vector<8x64xf32>, vector<8x64xf32> -> vector<64x64xf32>
    %13 = arith.mulf %12, %1 : vector<64x64xf32>
    %14 = arith.truncf %13 : vector<64x64xf32> to vector<64x64xbf16>
    %c1280 = arith.constant 1280 : index
    %c0_10 = arith.constant 0 : index
    %15 = vector.load %arg2[%c1280, %c0_10] : memref<1408x64xbf16, #tpu.memory_space<vmem>>, vector<64x64xbf16>
    %cst_11 = arith.constant dense<0.000000e+00> : vector<64x64xf32>
    %16 = tpu.matmul %14, %15, %cst_11 {dimension_numbers = #tpu.dot_dimension_numbers<[1], [0], [0], [1], [0, 0, 1, 1], [], []>} : vector<64x64xbf16>, vector<64x64xbf16>, vector<64x64xf32> -> vector<64x64xf32>
    %17 = tpu.concatenate %10, %10, %10, %10, %10, %10, %10, %10 in 0 : vector<8x64xf32>, vector<8x64xf32>, vector<8x64xf32>, vector<8x64xf32>, vector<8x64xf32>, vector<8x64xf32>, vector<8x64xf32>, vector<8x64xf32> -> vector<64x64xf32>
    %18 = arith.mulf %17, %1 : vector<64x64xf32>
    %cst_12 = arith.constant dense<0.000000e+00> : vector<8x64xf32>
    %19 = tpu.matmul %9, %18, %cst_12 {dimension_numbers = #tpu.dot_dimension_numbers<[1], [1], [0], [0], [0, 0, 1, 0], [], []>} : vector<8x64xf32>, vector<64x64xf32>, vector<8x64xf32> -> vector<8x64xf32>
    %20 = arith.addf %19, %2 : vector<8x64xf32>
    %cst_13 = arith.constant dense<0xFF800000> : vector<8xf32>
    %21 = vector.multi_reduction <maximumf>, %20, %cst_13 [1] : vector<8x64xf32> to vector<8xf32>
    %22 = vector.shape_cast %21 : vector<8xf32> to vector<8x1xf32>
    %23 = vector.broadcast %22 : vector<8x1xf32> to vector<8x64xf32>
    %24 = arith.subf %20, %23 : vector<8x64xf32>
    %25 = math.exp %24 : vector<8x64xf32>
    %cst_14 = arith.constant dense<0.000000e+00> : vector<8x64xf32>
    %26 = tpu.matmul %25, %1, %cst_14 {dimension_numbers = #tpu.dot_dimension_numbers<[1], [0], [0], [1], [0, 0, 1, 1], [], []>} : vector<8x64xf32>, vector<64x64xf32>, vector<8x64xf32> -> vector<8x64xf32>
    %cst_15 = arith.constant 1.000000e-30 : f32
    %27 = vector.broadcast %cst_15 : f32 to vector<8x64xf32>
    %28 = arith.maximumf %26, %27 : vector<8x64xf32>
    %29 = tpu.reciprocal %28 {approx = true} : vector<8x64xf32> -> vector<8x64xf32>
    %30 = arith.mulf %25, %29 : vector<8x64xf32>
    %31 = tpu.concatenate %9, %9, %9, %9, %9, %9, %9, %9 in 1 : vector<8x64xf32>, vector<8x64xf32>, vector<8x64xf32>, vector<8x64xf32>, vector<8x64xf32>, vector<8x64xf32>, vector<8x64xf32>, vector<8x64xf32> -> vector<8x512xf32>
    %32 = arith.mulf %31, %3 : vector<8x512xf32>
    %33 = arith.truncf %32 : vector<8x512xf32> to vector<8x512xbf16>
    %c0_16 = arith.constant 0 : index
    %c0_17 = arith.constant 0 : index
    %34 = vector.load %arg2[%c0_16, %c0_17] : memref<1408x64xbf16, #tpu.memory_space<vmem>>, vector<512x64xbf16>
    %cst_18 = arith.constant dense<0.000000e+00> : vector<8x64xf32>
    %35 = tpu.matmul %33, %34, %cst_18 {dimension_numbers = #tpu.dot_dimension_numbers<[1], [0], [0], [1], [0, 0, 1, 1], [], []>} : vector<8x512xbf16>, vector<512x64xbf16>, vector<8x64xf32> -> vector<8x64xf32>
    %36 = arith.addf %30, %35 : vector<8x64xf32>
    %cst_19 = arith.constant dense<0.000000e+00> : vector<8x64xf32>
    %37 = tpu.matmul %36, %16, %cst_19 {dimension_numbers = #tpu.dot_dimension_numbers<[1], [0], [0], [1], [0, 0, 1, 1], [], []>} : vector<8x64xf32>, vector<64x64xf32>, vector<8x64xf32> -> vector<8x64xf32>
    %c72 = arith.constant 72 : index
    %c0_20 = arith.constant 0 : index
    %38 = vector.load %arg4[%c72, %c0_20] : memref<144x64xf32, #tpu.memory_space<vmem>>, vector<8x64xf32>
    %39 = arith.addf %37, %38 : vector<8x64xf32>
    %40 = arith.addf %39, %0 : vector<8x64xf32>
    %c96 = arith.constant 96 : index
    %c0_21 = arith.constant 0 : index
    %41 = vector.load %arg4[%c96, %c0_21] : memref<144x64xf32, #tpu.memory_space<vmem>>, vector<8x64xf32>
    %c104 = arith.constant 104 : index
    %c0_22 = arith.constant 0 : index
    %42 = vector.load %arg4[%c104, %c0_22] : memref<144x64xf32, #tpu.memory_space<vmem>>, vector<8x64xf32>
    %cst_23 = arith.constant dense<0.000000e+00> : vector<8xf32>
    %43 = vector.multi_reduction <add>, %40, %cst_23 [1] : vector<8x64xf32> to vector<8xf32>
    %44 = vector.shape_cast %43 : vector<8xf32> to vector<8x1xf32>
    %cst_24 = arith.constant 1.562500e-02 : f32
    %45 = vector.broadcast %cst_24 : f32 to vector<8x1xf32>
    %46 = arith.mulf %44, %45 : vector<8x1xf32>
    %47 = vector.broadcast %46 : vector<8x1xf32> to vector<8x64xf32>
    %48 = arith.subf %40, %47 : vector<8x64xf32>
    %49 = arith.mulf %48, %48 : vector<8x64xf32>
    %cst_25 = arith.constant dense<0.000000e+00> : vector<8xf32>
    %50 = vector.multi_reduction <add>, %49, %cst_25 [1] : vector<8x64xf32> to vector<8xf32>
    %51 = vector.shape_cast %50 : vector<8xf32> to vector<8x1xf32>
    %cst_26 = arith.constant 1.562500e-02 : f32
    %52 = vector.broadcast %cst_26 : f32 to vector<8x1xf32>
    %53 = arith.mulf %51, %52 : vector<8x1xf32>
    %cst_27 = arith.constant 9.99999974E-6 : f32
    %54 = vector.broadcast %cst_27 : f32 to vector<8x1xf32>
    %55 = arith.addf %53, %54 : vector<8x1xf32>
    %56 = math.rsqrt %55 : vector<8x1xf32>
    %57 = vector.broadcast %56 : vector<8x1xf32> to vector<8x64xf32>
    %58 = arith.mulf %48, %57 : vector<8x64xf32>
    %59 = arith.mulf %58, %41 : vector<8x64xf32>
    %60 = arith.addf %59, %42 : vector<8x64xf32>
    %61 = arith.truncf %60 : vector<8x64xf32> to vector<8x64xbf16>
    %c64_28 = arith.constant 64 : index
    %c0_29 = arith.constant 0 : index
    %62 = vector.load %arg1[%c64_28, %c0_29] : memref<192x256xbf16, #tpu.memory_space<vmem>>, vector<64x192xbf16>
    %cst_30 = arith.constant dense<0.000000e+00> : vector<8x192xf32>
    %63 = tpu.matmul %61, %62, %cst_30 {dimension_numbers = #tpu.dot_dimension_numbers<[1], [0], [0], [1], [0, 0, 1, 1], [], []>} : vector<8x64xbf16>, vector<64x192xbf16>, vector<8x192xf32> -> vector<8x192xf32>
    %c8 = arith.constant 8 : index
    %c0_31 = arith.constant 0 : index
    %64 = vector.load %arg3[%c8, %c0_31] : memref<24x256xf32, #tpu.memory_space<vmem>>, vector<8x192xf32>
    %65 = arith.addf %63, %64 : vector<8x192xf32>
    %66 = vector.extract_strided_slice %65 {offsets = [0, 0], sizes = [8, 64], strides = [1, 1]} : vector<8x192xf32> to vector<8x64xf32>
    %67 = vector.extract_strided_slice %65 {offsets = [0, 64], sizes = [8, 64], strides = [1, 1]} : vector<8x192xf32> to vector<8x64xf32>
    %68 = vector.extract_strided_slice %65 {offsets = [0, 128], sizes = [8, 64], strides = [1, 1]} : vector<8x192xf32> to vector<8x64xf32>
    %69 = tpu.concatenate %68, %68, %68, %68, %68, %68, %68, %68 in 0 : vector<8x64xf32>, vector<8x64xf32>, vector<8x64xf32>, vector<8x64xf32>, vector<8x64xf32>, vector<8x64xf32>, vector<8x64xf32>, vector<8x64xf32> -> vector<64x64xf32>
    %70 = arith.mulf %69, %1 : vector<64x64xf32>
    %71 = arith.truncf %70 : vector<64x64xf32> to vector<64x64xbf16>
    %c1344 = arith.constant 1344 : index
    %c0_32 = arith.constant 0 : index
    %72 = vector.load %arg2[%c1344, %c0_32] : memref<1408x64xbf16, #tpu.memory_space<vmem>>, vector<64x64xbf16>
    %cst_33 = arith.constant dense<0.000000e+00> : vector<64x64xf32>
    %73 = tpu.matmul %71, %72, %cst_33 {dimension_numbers = #tpu.dot_dimension_numbers<[1], [0], [0], [1], [0, 0, 1, 1], [], []>} : vector<64x64xbf16>, vector<64x64xbf16>, vector<64x64xf32> -> vector<64x64xf32>
    %74 = tpu.concatenate %67, %67, %67, %67, %67, %67, %67, %67 in 0 : vector<8x64xf32>, vector<8x64xf32>, vector<8x64xf32>, vector<8x64xf32>, vector<8x64xf32>, vector<8x64xf32>, vector<8x64xf32>, vector<8x64xf32> -> vector<64x64xf32>
    %75 = arith.mulf %74, %1 : vector<64x64xf32>
    %cst_34 = arith.constant dense<0.000000e+00> : vector<8x64xf32>
    %76 = tpu.matmul %66, %75, %cst_34 {dimension_numbers = #tpu.dot_dimension_numbers<[1], [1], [0], [0], [0, 0, 1, 0], [], []>} : vector<8x64xf32>, vector<64x64xf32>, vector<8x64xf32> -> vector<8x64xf32>
    %77 = arith.addf %76, %2 : vector<8x64xf32>
    %cst_35 = arith.constant dense<0xFF800000> : vector<8xf32>
    %78 = vector.multi_reduction <maximumf>, %77, %cst_35 [1] : vector<8x64xf32> to vector<8xf32>
    %79 = vector.shape_cast %78 : vector<8xf32> to vector<8x1xf32>
    %80 = vector.broadcast %79 : vector<8x1xf32> to vector<8x64xf32>
    %81 = arith.subf %77, %80 : vector<8x64xf32>
    %82 = math.exp %81 : vector<8x64xf32>
    %cst_36 = arith.constant dense<0.000000e+00> : vector<8x64xf32>
    %83 = tpu.matmul %82, %1, %cst_36 {dimension_numbers = #tpu.dot_dimension_numbers<[1], [0], [0], [1], [0, 0, 1, 1], [], []>} : vector<8x64xf32>, vector<64x64xf32>, vector<8x64xf32> -> vector<8x64xf32>
    %cst_37 = arith.constant 1.000000e-30 : f32
    %84 = vector.broadcast %cst_37 : f32 to vector<8x64xf32>
    %85 = arith.maximumf %83, %84 : vector<8x64xf32>
    %86 = tpu.reciprocal %85 {approx = true} : vector<8x64xf32> -> vector<8x64xf32>
    %87 = arith.mulf %82, %86 : vector<8x64xf32>
    %88 = tpu.concatenate %66, %66, %66, %66, %66, %66, %66, %66 in 1 : vector<8x64xf32>, vector<8x64xf32>, vector<8x64xf32>, vector<8x64xf32>, vector<8x64xf32>, vector<8x64xf32>, vector<8x64xf32>, vector<8x64xf32> -> vector<8x512xf32>
    %89 = arith.mulf %88, %3 : vector<8x512xf32>
    %90 = arith.truncf %89 : vector<8x512xf32> to vector<8x512xbf16>
    %c512 = arith.constant 512 : index
    %c0_38 = arith.constant 0 : index
    %91 = vector.load %arg2[%c512, %c0_38] : memref<1408x64xbf16, #tpu.memory_space<vmem>>, vector<512x64xbf16>
    %cst_39 = arith.constant dense<0.000000e+00> : vector<8x64xf32>
    %92 = tpu.matmul %90, %91, %cst_39 {dimension_numbers = #tpu.dot_dimension_numbers<[1], [0], [0], [1], [0, 0, 1, 1], [], []>} : vector<8x512xbf16>, vector<512x64xbf16>, vector<8x64xf32> -> vector<8x64xf32>
    %93 = arith.addf %87, %92 : vector<8x64xf32>
    %cst_40 = arith.constant dense<0.000000e+00> : vector<8x64xf32>
    %94 = tpu.matmul %93, %73, %cst_40 {dimension_numbers = #tpu.dot_dimension_numbers<[1], [0], [0], [1], [0, 0, 1, 1], [], []>} : vector<8x64xf32>, vector<64x64xf32>, vector<8x64xf32> -> vector<8x64xf32>
    %c80 = arith.constant 80 : index
    %c0_41 = arith.constant 0 : index
    %95 = vector.load %arg4[%c80, %c0_41] : memref<144x64xf32, #tpu.memory_space<vmem>>, vector<8x64xf32>
    %96 = arith.addf %94, %95 : vector<8x64xf32>
    %97 = arith.addf %96, %60 : vector<8x64xf32>
    %c112 = arith.constant 112 : index
    %c0_42 = arith.constant 0 : index
    %98 = vector.load %arg4[%c112, %c0_42] : memref<144x64xf32, #tpu.memory_space<vmem>>, vector<8x64xf32>
    %c120 = arith.constant 120 : index
    %c0_43 = arith.constant 0 : index
    %99 = vector.load %arg4[%c120, %c0_43] : memref<144x64xf32, #tpu.memory_space<vmem>>, vector<8x64xf32>
    %cst_44 = arith.constant dense<0.000000e+00> : vector<8xf32>
    %100 = vector.multi_reduction <add>, %97, %cst_44 [1] : vector<8x64xf32> to vector<8xf32>
    %101 = vector.shape_cast %100 : vector<8xf32> to vector<8x1xf32>
    %cst_45 = arith.constant 1.562500e-02 : f32
    %102 = vector.broadcast %cst_45 : f32 to vector<8x1xf32>
    %103 = arith.mulf %101, %102 : vector<8x1xf32>
    %104 = vector.broadcast %103 : vector<8x1xf32> to vector<8x64xf32>
    %105 = arith.subf %97, %104 : vector<8x64xf32>
    %106 = arith.mulf %105, %105 : vector<8x64xf32>
    %cst_46 = arith.constant dense<0.000000e+00> : vector<8xf32>
    %107 = vector.multi_reduction <add>, %106, %cst_46 [1] : vector<8x64xf32> to vector<8xf32>
    %108 = vector.shape_cast %107 : vector<8xf32> to vector<8x1xf32>
    %cst_47 = arith.constant 1.562500e-02 : f32
    %109 = vector.broadcast %cst_47 : f32 to vector<8x1xf32>
    %110 = arith.mulf %108, %109 : vector<8x1xf32>
    %cst_48 = arith.constant 9.99999974E-6 : f32
    %111 = vector.broadcast %cst_48 : f32 to vector<8x1xf32>
    %112 = arith.addf %110, %111 : vector<8x1xf32>
    %113 = math.rsqrt %112 : vector<8x1xf32>
    %114 = vector.broadcast %113 : vector<8x1xf32> to vector<8x64xf32>
    %115 = arith.mulf %105, %114 : vector<8x64xf32>
    %116 = arith.mulf %115, %98 : vector<8x64xf32>
    %117 = arith.addf %116, %99 : vector<8x64xf32>
    %118 = arith.truncf %117 : vector<8x64xf32> to vector<8x64xbf16>
    %c128 = arith.constant 128 : index
    %c0_49 = arith.constant 0 : index
    %119 = vector.load %arg1[%c128, %c0_49] : memref<192x256xbf16, #tpu.memory_space<vmem>>, vector<64x256xbf16>
    %cst_50 = arith.constant dense<0.000000e+00> : vector<8x256xf32>
    %120 = tpu.matmul %118, %119, %cst_50 {dimension_numbers = #tpu.dot_dimension_numbers<[1], [0], [0], [1], [0, 0, 1, 1], [], []>} : vector<8x64xbf16>, vector<64x256xbf16>, vector<8x256xf32> -> vector<8x256xf32>
    %c16 = arith.constant 16 : index
    %c0_51 = arith.constant 0 : index
    %121 = vector.load %arg3[%c16, %c0_51] : memref<24x256xf32, #tpu.memory_space<vmem>>, vector<8x256xf32>
    %122 = arith.addf %120, %121 : vector<8x256xf32>
    %cst_52 = arith.constant 0.000000e+00 : f32
    %123 = vector.broadcast %cst_52 : f32 to vector<8x256xf32>
    %124 = arith.cmpf ogt, %122, %123 : vector<8x256xf32>
    %cst_53 = arith.constant 0.00999999977 : f32
    %125 = vector.broadcast %cst_53 : f32 to vector<8x256xf32>
    %126 = arith.mulf %125, %122 : vector<8x256xf32>
    %127 = arith.select %124, %122, %126 : vector<8x256xi1>, vector<8x256xf32>
    %128 = arith.truncf %127 : vector<8x256xf32> to vector<8x256xbf16>
    %c1024 = arith.constant 1024 : index
    %c0_54 = arith.constant 0 : index
    %129 = vector.load %arg2[%c1024, %c0_54] : memref<1408x64xbf16, #tpu.memory_space<vmem>>, vector<256x64xbf16>
    %cst_55 = arith.constant dense<0.000000e+00> : vector<8x64xf32>
    %130 = tpu.matmul %128, %129, %cst_55 {dimension_numbers = #tpu.dot_dimension_numbers<[1], [0], [0], [1], [0, 0, 1, 1], [], []>} : vector<8x256xbf16>, vector<256x64xbf16>, vector<8x64xf32> -> vector<8x64xf32>
    %c88 = arith.constant 88 : index
    %c0_56 = arith.constant 0 : index
    %131 = vector.load %arg4[%c88, %c0_56] : memref<144x64xf32, #tpu.memory_space<vmem>>, vector<8x64xf32>
    %132 = arith.addf %130, %131 : vector<8x64xf32>
    %133 = arith.addf %132, %117 : vector<8x64xf32>
    %c128_57 = arith.constant 128 : index
    %c0_58 = arith.constant 0 : index
    %134 = vector.load %arg4[%c128_57, %c0_58] : memref<144x64xf32, #tpu.memory_space<vmem>>, vector<8x64xf32>
    %c136 = arith.constant 136 : index
    %c0_59 = arith.constant 0 : index
    %135 = vector.load %arg4[%c136, %c0_59] : memref<144x64xf32, #tpu.memory_space<vmem>>, vector<8x64xf32>
    %cst_60 = arith.constant dense<0.000000e+00> : vector<8xf32>
    %136 = vector.multi_reduction <add>, %133, %cst_60 [1] : vector<8x64xf32> to vector<8xf32>
    %137 = vector.shape_cast %136 : vector<8xf32> to vector<8x1xf32>
    %cst_61 = arith.constant 1.562500e-02 : f32
    %138 = vector.broadcast %cst_61 : f32 to vector<8x1xf32>
    %139 = arith.mulf %137, %138 : vector<8x1xf32>
    %140 = vector.broadcast %139 : vector<8x1xf32> to vector<8x64xf32>
    %141 = arith.subf %133, %140 : vector<8x64xf32>
    %142 = arith.mulf %141, %141 : vector<8x64xf32>
    %cst_62 = arith.constant dense<0.000000e+00> : vector<8xf32>
    %143 = vector.multi_reduction <add>, %142, %cst_62 [1] : vector<8x64xf32> to vector<8xf32>
    %144 = vector.shape_cast %143 : vector<8xf32> to vector<8x1xf32>
    %cst_63 = arith.constant 1.562500e-02 : f32
    %145 = vector.broadcast %cst_63 : f32 to vector<8x1xf32>
    %146 = arith.mulf %144, %145 : vector<8x1xf32>
    %cst_64 = arith.constant 9.99999974E-6 : f32
    %147 = vector.broadcast %cst_64 : f32 to vector<8x1xf32>
    %148 = arith.addf %146, %147 : vector<8x1xf32>
    %149 = math.rsqrt %148 : vector<8x1xf32>
    %150 = vector.broadcast %149 : vector<8x1xf32> to vector<8x64xf32>
    %151 = arith.mulf %141, %150 : vector<8x64xf32>
    %152 = arith.mulf %151, %134 : vector<8x64xf32>
    %153 = arith.addf %152, %135 : vector<8x64xf32>
    %c0_65 = arith.constant 0 : index
    %c0_66 = arith.constant 0 : index
    %154 = vector.load %arg6[%c0_65, %c0_66] : memref<8x64xf32, #tpu.memory_space<vmem>>, vector<8x64xf32>
    tpu.vector_store %arg6[%c0_65, %c0_66], %153 {strides = array<i32>} : memref<8x64xf32, #tpu.memory_space<vmem>>, vector<8x64xf32>,
    return
  }
}

</mosaic_0001>

<llo_original>
// kernel: decoder_layer.1
$region0: #{decoder_layer.1}
  #allocation0 [shape = 'u32[]', space=smem, size = 0x4, offset = 0x4, fixed_abs, tag = 'smem constant byte address 0x4 - core index']
  #allocation1 [shape = 'u32[144,128]{1,0:T(1,128)}', space=vmem, size = 0x12000, scoped, tag = 'internal scratch']
  %s0 = inlined_call_operand.vmem [shape: f32[8,64], index: 0, kind: input, shape index: {}]
  %s1 = inlined_call_operand.vmem [shape: bf16[192,256], index: 1, kind: input, shape index: {}]
  %s2 = inlined_call_operand.vmem [shape: bf16[1408,64], index: 2, kind: input, shape index: {}]
  %s3 = inlined_call_operand.vmem [shape: f32[24,256], index: 3, kind: input, shape index: {}]
  %s4 = inlined_call_operand.vmem [shape: f32[144,64], index: 4, kind: input, shape index: {}]
  %s5 = inlined_call_operand.vmem [shape: f32[8,512], index: 5, kind: input, shape index: {}]
  %s6 = inlined_call_operand.vmem [shape: f32[8,64], index: 6, kind: output, shape index: {}]
  %s7 = sld [smem:[#allocation0]]
  $region34: #{decoder_layer.1} parent=0
    _
  %s9 = ssub.s32 1, %s7
  %s10 = scalar_select 0, %s9, %s7
  // Predicated region
  $region2: #{decoder_layer.1} parent=0 // pred_check
    _
  $region3: #{decoder_layer.1} parent=0 // pred_check_branch
    %12 = sbr.rel (0) target = $region5
  $region4: #{decoder_layer.1} parent=0 // pred_region
    _
  $region5: #{decoder_layer.1} parent=0 // pred_fallthru
    _
  // Predicated region
  $region6: #{decoder_layer.1} parent=0 // pred_check
    _
  $region7: #{decoder_layer.1} parent=0 // pred_check_branch
    %14 = sbr.rel (0) target = $region9
  $region8: #{decoder_layer.1} parent=0 // pred_region
    _
  $region9: #{decoder_layer.1} parent=0 // pred_fallthru
    _
  // Predicated region
  $region10: #{decoder_layer.1} parent=0 // pred_check
    _
  $region11: #{decoder_layer.1} parent=0 // pred_check_branch
    %16 = sbr.rel (0) target = $region13
  $region12: #{decoder_layer.1} parent=0 // pred_region
    _
  $region13: #{decoder_layer.1} parent=0 // pred_fallthru
    _
  // Predicated region
  $region14: #{decoder_layer.1} parent=0 // pred_check
    _
  $region15: #{decoder_layer.1} parent=0 // pred_check_branch
    %18 = sbr.rel (0) target = $region17
  $region16: #{decoder_layer.1} parent=0 // pred_region
    _
  $region17: #{decoder_layer.1} parent=0 // pred_fallthru
    _
  // Predicated region
  $region18: #{decoder_layer.1} parent=0 // pred_check
    _
  $region19: #{decoder_layer.1} parent=0 // pred_check_branch
    %20 = sbr.rel (0) target = $region21
  $region20: #{decoder_layer.1} parent=0 // pred_region
    _
  $region21: #{decoder_layer.1} parent=0 // pred_fallthru
    _
  // Predicated region
  $region22: #{decoder_layer.1} parent=0 // pred_check
    _
  $region23: #{decoder_layer.1} parent=0 // pred_check_branch
    %22 = sbr.rel (0) target = $region25
  $region24: #{decoder_layer.1} parent=0 // pred_region
    _
  $region25: #{decoder_layer.1} parent=0 // pred_fallthru
    _
  %v24 = vld [vmem:[%s0] sm:$0xff]
  %v25 = vld [vmem:[%s4] sm:$0xff]
  %v26 = vld [vmem:[%s4 + $0x8] sm:$0xff]
  %v27 = vld [vmem:[%s4 + $0x10] sm:$0xff]
  %v28 = vld [vmem:[%s4 + $0x18] sm:$0xff]
  %v29 = vld [vmem:[%s4 + $0x20] sm:$0xff]
  %v30 = vld [vmem:[%s4 + $0x28] sm:$0xff]
  %v31 = vld [vmem:[%s4 + $0x30] sm:$0xff]
  %v32 = vld [vmem:[%s4 + $0x38] sm:$0xff]
  %v33 = vld [vmem:[%s4 + $0x40] sm:$0xff]
  %v34 = vld [vmem:[%s5] sm:$0xff]
  %v35 = vld [vmem:[%s5 + $0x8] sm:$0xff]
  %v36 = vld [vmem:[%s5 + $0x10] sm:$0xff]
  %v37 = vld [vmem:[%s5 + $0x18] sm:$0xff]
  %v38 = vpack.c.bf16 %v24, %v24
  %v39 = vld [vmem:[%s1] sm:$0xff]
  %v40 = vld [vmem:[%s1 + $0x8] sm:$0xff]
  %v41 = vld [vmem:[%s1 + $0x10] sm:$0xff]
  %v42 = vld [vmem:[%s1 + $0x18] sm:$0xff]
  %v43 = vld [vmem:[%s1 + $0x20] sm:$0xff]
  %v44 = vld [vmem:[%s1 + $0x28] sm:$0xff]
  %v45 = vld [vmem:[%s1 + $0x30] sm:$0xff]
  %v46 = vld [vmem:[%s1 + $0x38] sm:$0xff]
  %v47 = vld [vmem:[%s3] sm:$0xff]
  %v48 = vld [vmem:[%s3 + $0x8] sm:$0xff]
  %v57 = vunpack.c.l.b16 %v39
  %v58 = vunpack.c.h.b16 %v39
  %v59 = vunpack.c.l.b16 %v40
  %v60 = vunpack.c.h.b16 %v40
  %v61 = vunpack.c.l.b16 %v41
  %v62 = vunpack.c.h.b16 %v41
  %v63 = vunpack.c.l.b16 %v42
  %v64 = vunpack.c.h.b16 %v42
  %v65 = vunpack.c.l.b16 %v43
  %v66 = vunpack.c.h.b16 %v43
  %v67 = vunpack.c.l.b16 %v44
  %v68 = vunpack.c.h.b16 %v44
  %v69 = vunpack.c.l.b16 %v45
  %v70 = vunpack.c.h.b16 %v45
  %v71 = vunpack.c.l.b16 %v46
  %v72 = vunpack.c.h.b16 %v46
  %v73 = vpack.c.b16 %v59, %v57
  %v74 = vpack.c.b16 %v60, %v58
  %v75 = vpack.c.b16 %v63, %v61
  %v76 = vpack.c.b16 %v64, %v62
  %v77 = vpack.c.b16 %v67, %v65
  %v78 = vpack.c.b16 %v68, %v66
  %v79 = vpack.c.b16 %v71, %v69
  %v80 = vpack.c.b16 %v72, %v70
  %vm89 = vcmask 523264
  %v91 = vsel %vm89, %v38, 0
  %93 = vmatprep.subr.bf16.mxu0 %v74
  %94 = vmatpush1.bf16.msra.mxu0 %v73
  %95 = vmatprep.subr.bf16.mxu0 %v76
  %96 = vmatpush1.bf16.msra.mxu0 %v75
  %97 = vmatprep.subr.bf16.mxu0 %v78
  %98 = vmatpush1.bf16.msra.mxu0 %v77
  %99 = vmatprep.subr.bf16.mxu0 %v80
  %100 = vmatpush1.bf16.msra.mxu0 %v79
  %101 = vmatprep.subr.bf16.mxu0 0
  %102 = vmatpush1.bf16.msra.mxu0 0
  %103 = vmatprep.subr.bf16.mxu0 0
  %104 = vmatpush1.bf16.msra.mxu0 0
  %105 = vmatprep.subr.bf16.mxu0 0
  %106 = vmatpush1.bf16.msra.mxu0 0
  %107 = vmatprep.subr.bf16.mxu0 0
  %108 = vmatpush1.bf16.msra.mxu0 0
  %109 = vmatprep.subr.bf16.mxu0 0
  %110 = vmatpush1.bf16.msra.mxu0 0
  %111 = vmatprep.subr.bf16.mxu0 0
  %112 = vmatpush1.bf16.msra.mxu0 0
  %113 = vmatprep.subr.bf16.mxu0 0
  %114 = vmatpush1.bf16.msra.mxu0 0
  %115 = vmatprep.subr.bf16.mxu0 0
  %116 = vmatpush1.bf16.msra.mxu0 0
  %117 = vmatprep.subr.bf16.mxu0 0
  %118 = vmatpush1.bf16.msra.mxu0 0
  %119 = vmatprep.subr.bf16.mxu0 0
  %120 = vmatpush1.bf16.msra.mxu0 0
  %121 = vmatprep.subr.bf16.mxu0 0
  %122 = vmatpush1.bf16.msra.mxu0 0
  %123 = vmatprep.subr.bf16.mxu0 0
  %124 = vmatpush1.bf16.msra.mxu0 0
  %125 = vmatprep.mubr.bf16.mxu0 0
  %126 = vmatmul.mubr.bf16.gmra.mrb[0].mxu0 %v91
  %v127 = vpop.f32.mrb[0].mxu0
  %v128 = vadd.f32 %v47, %v127
  %v129 = vpop.f32.mrb[0].mxu0
  %v130 = vadd.f32 %v48, %v129
  %v131 = vpop.f32.mrb[0].mxu0
  %v132 = vpop.f32.mrb[0].mxu0
  %133 = vdwg.mxu0
  %v134 = vmul.f32 %v130, %v25
  %v135 = vmul.f32 %v130, %v26
  %v136 = vmul.f32 %v130, %v27
  %v137 = vmul.f32 %v130, %v28
  %v138 = vmul.f32 %v130, %v29
  %v139 = vmul.f32 %v130, %v30
  %v140 = vmul.f32 %v130, %v31
  %v141 = vmul.f32 %v130, %v32
  %v142 = vpack.c.bf16 %v135, %v134
  %v143 = vpack.c.bf16 %v137, %v136
  %v144 = vpack.c.bf16 %v139, %v138
  %v145 = vpack.c.bf16 %v141, %v140
  %v146 = vld [vmem:[%s2 + $0x280] sm:$0xf]
  %v147 = vld [vmem:[%s2 + $0x284] sm:$0xf]
  %v148 = vld [vmem:[%s2 + $0x288] sm:$0xf]
  %v149 = vld [vmem:[%s2 + $0x28c] sm:$0xf]
  %v150 = vld [vmem:[%s2 + $0x290] sm:$0xf]
  %v151 = vld [vmem:[%s2 + $0x294] sm:$0xf]
  %v152 = vld [vmem:[%s2 + $0x298] sm:$0xf]
  %v153 = vld [vmem:[%s2 + $0x29c] sm:$0xf]
  %v162 = vunpack.c.l.b16 %v146
  %v163 = vunpack.c.l.b16 %v147
  %v164 = vunpack.c.l.b16 %v148
  %v165 = vunpack.c.l.b16 %v149
  %v166 = vunpack.c.l.b16 %v150
  %v167 = vunpack.c.l.b16 %v151
  %v168 = vunpack.c.l.b16 %v152
  %v169 = vunpack.c.l.b16 %v153
  %v170 = vpack.c.b16 %v163, %v162
  %v171 = vpack.c.b16 %v165, %v164
  %v172 = vpack.c.b16 %v167, %v166
  %v173 = vpack.c.b16 %v169, %v168
  %v179 = vsel %vm89, %v142, 0
  %v182 = vsel %vm89, %v143, 0
  %v185 = vsel %vm89, %v144, 0
  %v188 = vsel %vm89, %v145, 0
  %190 = vmatprep.subr.bf16.mxu0 0
  %191 = vmatpush1.bf16.msra.mxu0 %v170
  %192 = vmatprep.subr.bf16.mxu0 0
  %193 = vmatpush1.bf16.msra.mxu0 %v171
  %194 = vmatprep.subr.bf16.mxu0 0
  %195 = vmatpush1.bf16.msra.mxu0 %v172
  %196 = vmatprep.subr.bf16.mxu0 0
  %197 = vmatpush1.bf16.msra.mxu0 %v173
  %198 = vmatprep.subr.bf16.mxu0 0
  %199 = vmatpush1.bf16.msra.mxu0 0
  %200 = vmatprep.subr.bf16.mxu0 0
  %201 = vmatpush1.bf16.msra.mxu0 0
  %202 = vmatprep.subr.bf16.mxu0 0
  %203 = vmatpush1.bf16.msra.mxu0 0
  %204 = vmatprep.subr.bf16.mxu0 0
  %205 = vmatpush1.bf16.msra.mxu0 0
  %206 = vmatprep.subr.bf16.mxu0 0
  %207 = vmatpush1.bf16.msra.mxu0 0
  %208 = vmatprep.subr.bf16.mxu0 0
  %209 = vmatpush1.bf16.msra.mxu0 0
  %210 = vmatprep.subr.bf16.mxu0 0
  %211 = vmatpush1.bf16.msra.mxu0 0
  %212 = vmatprep.subr.bf16.mxu0 0
  %213 = vmatpush1.bf16.msra.mxu0 0
  %214 = vmatprep.subr.bf16.mxu0 0
  %215 = vmatpush1.bf16.msra.mxu0 0
  %216 = vmatprep.subr.bf16.mxu0 0
  %217 = vmatpush1.bf16.msra.mxu0 0
  %218 = vmatprep.subr.bf16.mxu0 0
  %219 = vmatpush1.bf16.msra.mxu0 0
  %220 = vmatprep.subr.bf16.mxu0 0
  %221 = vmatpush1.bf16.msra.mxu0 0
  %222 = vmatprep.mubr.bf16.mxu0 0
  %223 = vmatmul.mubr.bf16.gmra.mrb[0].mxu0 %v179
  %v224 = vpop.f32.mrb[0].mxu0
  %v225 = vadd.f32 0.0, %v224
  %v226 = vpop.f32.mrb[0].mxu0
  %v227 = vpop.f32.mrb[0].mxu0
  %v228 = vadd.f32 0.0, %v227
  %v229 = vpop.f32.mrb[0].mxu0
  %230 = vmatprep.mubr.bf16.mxu0 0
  %231 = vmatmul.mubr.bf16.gmra.mrb[0].mxu0 %v182
  %v232 = vpop.f32.mrb[0].mxu0
  %v233 = vadd.f32 0.0, %v232
  %v234 = vpop.f32.mrb[0].mxu0
  %v235 = vpop.f32.mrb[0].mxu0
  %v236 = vadd.f32 0.0, %v235
  %v237 = vpop.f32.mrb[0].mxu0
  %238 = vmatprep.mubr.bf16.mxu0 0
  %239 = vmatmul.mubr.bf16.gmra.mrb[0].mxu0 %v185
  %v240 = vpop.f32.mrb[0].mxu0
  %v241 = vadd.f32 0.0, %v240
  %v242 = vpop.f32.mrb[0].mxu0
  %v243 = vpop.f32.mrb[0].mxu0
  %v244 = vadd.f32 0.0, %v243
  %v245 = vpop.f32.mrb[0].mxu0
  %246 = vmatprep.mubr.bf16.mxu0 0
  %247 = vmatmul.mubr.bf16.gmra.mrb[0].mxu0 %v188
  %v248 = vpop.f32.mrb[0].mxu0
  %v249 = vadd.f32 0.0, %v248
  %v250 = vpop.f32.mrb[0].mxu0
  %v251 = vpop.f32.mrb[0].mxu0
  %v252 = vadd.f32 0.0, %v251
  %v253 = vpop.f32.mrb[0].mxu0
  %254 = vdwg.mxu0
  %263 = vrot.lane.b32.xlu0 %v25, 64
  %v264 = vpop.permute.xlu0 %263
  %265 = vrot.lane.b32.xlu0 %v26, 64
  %v266 = vpop.permute.xlu0 %265
  %267 = vrot.lane.b32.xlu0 %v27, 64
  %v268 = vpop.permute.xlu0 %267
  %269 = vrot.lane.b32.xlu0 %v28, 64
  %v270 = vpop.permute.xlu0 %269
  %271 = vrot.lane.b32.xlu0 %v29, 64
  %v272 = vpop.permute.xlu0 %271
  %273 = vrot.lane.b32.xlu0 %v30, 64
  %v274 = vpop.permute.xlu0 %273
  %275 = vrot.lane.b32.xlu0 %v31, 64
  %v276 = vpop.permute.xlu0 %275
  %277 = vrot.lane.b32.xlu0 %v32, 64
  %v278 = vpop.permute.xlu0 %277
  %v287 = vmul.f32 %v128, %v264
  %v288 = vmul.f32 %v128, %v266
  %v289 = vmul.f32 %v128, %v268
  %v290 = vmul.f32 %v128, %v270
  %v291 = vmul.f32 %v128, %v272
  %v292 = vmul.f32 %v128, %v274
  %v293 = vmul.f32 %v128, %v276
  %v294 = vmul.f32 %v128, %v278
  %303 = vrot.lane.b32.xlu0 %v287, 64
  %v304 = vpop.permute.xlu0 %303
  %305 = vrot.lane.b32.xlu0 %v288, 64
  %v306 = vpop.permute.xlu0 %305
  %307 = vrot.lane.b32.xlu0 %v289, 64
  %v308 = vpop.permute.xlu0 %307
  %309 = vrot.lane.b32.xlu0 %v290, 64
  %v310 = vpop.permute.xlu0 %309
  %311 = vrot.lane.b32.xlu0 %v291, 64
  %v312 = vpop.permute.xlu0 %311
  %313 = vrot.lane.b32.xlu0 %v292, 64
  %v314 = vpop.permute.xlu0 %313
  %315 = vrot.lane.b32.xlu0 %v293, 64
  %v316 = vpop.permute.xlu0 %315
  %317 = vrot.lane.b32.xlu0 %v294, 64
  %v318 = vpop.permute.xlu0 %317
  %v320 = vsel %vm89, %v128, 0
  %v322 = vsel %vm89, %v304, 0
  %v324 = vsel %vm89, %v306, 0
  %v326 = vsel %vm89, %v308, 0
  %v328 = vsel %vm89, %v310, 0
  %v330 = vsel %vm89, %v312, 0
  %v332 = vsel %vm89, %v314, 0
  %v334 = vsel %vm89, %v316, 0
  %v336 = vsel %vm89, %v318, 0
  %338 = vmatprep.subr.mxu0 0.0
  %339 = vmatpush1.xpose.msra.mxu0 %v322
  %340 = vmatprep.subr.mxu0 0.0
  %341 = vmatpush1.xpose.msra.mxu0 %v324
  %342 = vmatprep.subr.mxu0 0.0
  %343 = vmatpush1.xpose.msra.mxu0 %v326
  %344 = vmatprep.subr.mxu0 0.0
  %345 = vmatpush1.xpose.msra.mxu0 %v328
  %346 = vmatprep.subr.mxu0 0.0
  %347 = vmatpush1.xpose.msra.mxu0 %v330
  %348 = vmatprep.subr.mxu0 0.0
  %349 = vmatpush1.xpose.msra.mxu0 %v332
  %350 = vmatprep.subr.mxu0 0.0
  %351 = vmatpush1.xpose.msra.mxu0 %v334
  %352 = vmatprep.subr.mxu0 0.0
  %353 = vmatpush1.xpose.msra.mxu0 %v336
  %354 = vmatprep.subr.mxu0 0.0
  %355 = vmatpush1.xpose.msra.mxu0 0.0
  %356 = vmatprep.subr.mxu0 0.0
  %357 = vmatpush1.xpose.msra.mxu0 0.0
  %358 = vmatprep.subr.mxu0 0.0
  %359 = vmatpush1.xpose.msra.mxu0 0.0
  %360 = vmatprep.subr.mxu0 0.0
  %361 = vmatpush1.xpose.msra.mxu0 0.0
  %362 = vmatprep.subr.mxu0 0.0
  %363 = vmatpush1.xpose.msra.mxu0 0.0
  %364 = vmatprep.subr.mxu0 0.0
  %365 = vmatpush1.xpose.msra.mxu0 0.0
  %366 = vmatprep.subr.mxu0 0.0
  %367 = vmatpush1.xpose.msra.mxu0 0.0
  %368 = vmatprep.subr.mxu0 0.0
  %369 = vmatpush1.xpose.msra.mxu0 0.0
  %370 = vmatprep.subr.mxu0 0.0
  %371 = vmatpush1.xpose.msra.mxu0 0.0
  %372 = vmatprep.subr.mxu0 0.0
  %373 = vmatpush1.xpose.msra.mxu0 0.0
  %374 = vmatprep.subr.mxu0 0.0
  %375 = vmatpush1.xpose.msra.mxu0 0.0
  %376 = vmatprep.subr.mxu0 0.0
  %377 = vmatpush1.xpose.msra.mxu0 0.0
  %378 = vmatprep.subr.mxu0 0.0
  %379 = vmatpush1.xpose.msra.mxu0 0.0
  %380 = vmatprep.subr.mxu0 0.0
  %381 = vmatpush1.xpose.msra.mxu0 0.0
  %382 = vmatprep.subr.mxu0 0.0
  %383 = vmatpush1.xpose.msra.mxu0 0.0
  %384 = vmatprep.subr.mxu0 0.0
  %385 = vmatpush1.xpose.msra.mxu0 0.0
  %386 = vmatprep.subr.mxu0 0.0
  %387 = vmatpush1.xpose.msra.mxu0 0.0
  %388 = vmatprep.subr.mxu0 0.0
  %389 = vmatpush1.xpose.msra.mxu0 0.0
  %390 = vmatprep.subr.mxu0 0.0
  %391 = vmatpush1.xpose.msra.mxu0 0.0
  %392 = vmatprep.subr.mxu0 0.0
  %393 = vmatpush1.xpose.msra.mxu0 0.0
  %394 = vmatprep.subr.mxu0 0.0
  %395 = vmatpush1.xpose.msra.mxu0 0.0
  %396 = vmatprep.subr.mxu0 0.0
  %397 = vmatpush1.xpose.msra.mxu0 0.0
  %398 = vmatprep.subr.mxu0 0.0
  %399 = vmatpush1.xpose.msra.mxu0 0.0
  %400 = vmatprep.subr.mxu0 0.0
  %401 = vmatpush1.xpose.msra.mxu0 0.0
  %402 = vmatprep.mubr.f32.mxu0 0.0
  %403 = vmatmul.mubr.f32.gmra.mrb[0].mxu0 %v320
  %v404 = vpop.f32.mrb[0].mxu0
  %v405 = vadd.f32 %v33, %v404
  %v406 = vpop.f32.mrb[0].mxu0
  %407 = vdwg.mxu0
  %v408 = vsel %vm89, %v405, -inf
  %409 = vmax.xlane.f32.xlu0 %v408
  %v410 = vpop.xlane.xlu0 %409
  %v411 = vsub.f32 %v405, %v410
  %v412 = vmul.f32 %v411, 1.442695
  %v413 = vpow.pop %v412
  %v415 = vsel %vm89, %v413, 0
  %417 = vmatprep.subr.mxu0 0.0
  %418 = vmatpush1.msra.mxu0 %v25
  %419 = vmatprep.subr.mxu0 0.0
  %420 = vmatpush1.msra.mxu0 %v26
  %421 = vmatprep.subr.mxu0 0.0
  %422 = vmatpush1.msra.mxu0 %v27
  %423 = vmatprep.subr.mxu0 0.0
  %424 = vmatpush1.msra.mxu0 %v28
  %425 = vmatprep.subr.mxu0 0.0
  %426 = vmatpush1.msra.mxu0 %v29
  %427 = vmatprep.subr.mxu0 0.0
  %428 = vmatpush1.msra.mxu0 %v30
  %429 = vmatprep.subr.mxu0 0.0
  %430 = vmatpush1.msra.mxu0 %v31
  %431 = vmatprep.subr.mxu0 0.0
  %432 = vmatpush1.msra.mxu0 %v32
  %433 = vmatprep.subr.mxu0 0.0
  %434 = vmatpush1.msra.mxu0 0.0
  %435 = vmatprep.subr.mxu0 0.0
  %436 = vmatpush1.msra.mxu0 0.0
  %437 = vmatprep.subr.mxu0 0.0
  %438 = vmatpush1.msra.mxu0 0.0
  %439 = vmatprep.subr.mxu0 0.0
  %440 = vmatpush1.msra.mxu0 0.0
  %441 = vmatprep.subr.mxu0 0.0
  %442 = vmatpush1.msra.mxu0 0.0
  %443 = vmatprep.subr.mxu0 0.0
  %444 = vmatpush1.msra.mxu0 0.0
  %445 = vmatprep.subr.mxu0 0.0
  %446 = vmatpush1.msra.mxu0 0.0
  %447 = vmatprep.subr.mxu0 0.0
  %448 = vmatpush1.msra.mxu0 0.0
  %449 = vmatprep.subr.mxu0 0.0
  %450 = vmatpush1.msra.mxu0 0.0
  %451 = vmatprep.subr.mxu0 0.0
  %452 = vmatpush1.msra.mxu0 0.0
  %453 = vmatprep.subr.mxu0 0.0
  %454 = vmatpush1.msra.mxu0 0.0
  %455 = vmatprep.subr.mxu0 0.0
  %456 = vmatpush1.msra.mxu0 0.0
  %457 = vmatprep.subr.mxu0 0.0
  %458 = vmatpush1.msra.mxu0 0.0
  %459 = vmatprep.subr.mxu0 0.0
  %460 = vmatpush1.msra.mxu0 0.0
  %461 = vmatprep.subr.mxu0 0.0
  %462 = vmatpush1.msra.mxu0 0.0
  %463 = vmatprep.subr.mxu0 0.0
  %464 = vmatpush1.msra.mxu0 0.0
  %465 = vmatprep.subr.mxu0 0.0
  %466 = vmatpush1.msra.mxu0 0.0
  %467 = vmatprep.subr.mxu0 0.0
  %468 = vmatpush1.msra.mxu0 0.0
  %469 = vmatprep.subr.mxu0 0.0
  %470 = vmatpush1.msra.mxu0 0.0
  %471 = vmatprep.subr.mxu0 0.0
  %472 = vmatpush1.msra.mxu0 0.0
  %473 = vmatprep.subr.mxu0 0.0
  %474 = vmatpush1.msra.mxu0 0.0
  %475 = vmatprep.subr.mxu0 0.0
  %476 = vmatpush1.msra.mxu0 0.0
  %477 = vmatprep.subr.mxu0 0.0
  %478 = vmatpush1.msra.mxu0 0.0
  %479 = vmatprep.subr.mxu0 0.0
  %480 = vmatpush1.msra.mxu0 0.0
  %481 = vmatprep.mubr.f32.mxu0 0.0
  %482 = vmatmul.mubr.f32.gmra.mrb[0].mxu0 %v415
  %v483 = vpop.f32.mrb[0].mxu0
  %v484 = vadd.f32 0.0, %v483
  %v485 = vpop.f32.mrb[0].mxu0
  %486 = vdwg.mxu0
  %v487 = vmax.f32 %v484, 1e-30
  %v488 = vrcp.pop %v487
  %v489 = vmul.f32 %v413, %v488
  %490 = vrot.lane.b32.xlu0 %v128, 64
  %v491 = vpop.permute.xlu0 %490
  %v493 = vsel %vm89, %v128, %v491
  %v494 = vmul.f32 %v493, %v34
  %v495 = vmul.f32 %v493, %v35
  %v496 = vmul.f32 %v493, %v36
  %v497 = vmul.f32 %v493, %v37
  %v498 = vpack.c.bf16 %v494, %v494
  %v499 = vpack.c.bf16 %v495, %v495
  %v500 = vpack.c.bf16 %v496, %v496
  %v501 = vpack.c.bf16 %v497, %v497
  %v502 = vld [vmem:[%s2] sm:$0xf]
  %v503 = vld [vmem:[%s2 + $0x4] sm:$0xf]
  %v504 = vld [vmem:[%s2 + $0x8] sm:$0xf]
  %v505 = vld [vmem:[%s2 + $0xc] sm:$0xf]
  %v506 = vld [vmem:[%s2 + $0x10] sm:$0xf]
  %v507 = vld [vmem:[%s2 + $0x14] sm:$0xf]
  %v508 = vld [vmem:[%s2 + $0x18] sm:$0xf]
  %v509 = vld [vmem:[%s2 + $0x1c] sm:$0xf]
  %v510 = vld [vmem:[%s2 + $0x20] sm:$0xf]
  %v511 = vld [vmem:[%s2 + $0x24] sm:$0xf]
  %v512 = vld [vmem:[%s2 + $0x28] sm:$0xf]
  %v513 = vld [vmem:[%s2 + $0x2c] sm:$0xf]
  %v514 = vld [vmem:[%s2 + $0x30] sm:$0xf]
  %v515 = vld [vmem:[%s2 + $0x34] sm:$0xf]
  %v516 = vld [vmem:[%s2 + $0x38] sm:$0xf]
  %v517 = vld [vmem:[%s2 + $0x3c] sm:$0xf]
  %v518 = vld [vmem:[%s2 + $0x40] sm:$0xf]
  %v519 = vld [vmem:[%s2 + $0x44] sm:$0xf]
  %v520 = vld [vmem:[%s2 + $0x48] sm:$0xf]
  %v521 = vld [vmem:[%s2 + $0x4c] sm:$0xf]
  %v522 = vld [vmem:[%s2 + $0x50] sm:$0xf]
  %v523 = vld [vmem:[%s2 + $0x54] sm:$0xf]
  %v524 = vld [vmem:[%s2 + $0x58] sm:$0xf]
  %v525 = vld [vmem:[%s2 + $0x5c] sm:$0xf]
  %v526 = vld [vmem:[%s2 + $0x60] sm:$0xf]
  %v527 = vld [vmem:[%s2 + $0x64] sm:$0xf]
  %v528 = vld [vmem:[%s2 + $0x68] sm:$0xf]
  %v529 = vld [vmem:[%s2 + $0x6c] sm:$0xf]
  %v530 = vld [vmem:[%s2 + $0x70] sm:$0xf]
  %v531 = vld [vmem:[%s2 + $0x74] sm:$0xf]
  %v532 = vld [vmem:[%s2 + $0x78] sm:$0xf]
  %v533 = vld [vmem:[%s2 + $0x7c] sm:$0xf]
  %v534 = vld [vmem:[%s2 + $0x80] sm:$0xf]
  %v535 = vld [vmem:[%s2 + $0x84] sm:$0xf]
  %v536 = vld [vmem:[%s2 + $0x88] sm:$0xf]
  %v537 = vld [vmem:[%s2 + $0x8c] sm:$0xf]
  %v538 = vld [vmem:[%s2 + $0x90] sm:$0xf]
  %v539 = vld [vmem:[%s2 + $0x94] sm:$0xf]
  %v540 = vld [vmem:[%s2 + $0x98] sm:$0xf]
  %v541 = vld [vmem:[%s2 + $0x9c] sm:$0xf]
  %v542 = vld [vmem:[%s2 + $0xa0] sm:$0xf]
  %v543 = vld [vmem:[%s2 + $0xa4] sm:$0xf]
  %v544 = vld [vmem:[%s2 + $0xa8] sm:$0xf]
  %v545 = vld [vmem:[%s2 + $0xac] sm:$0xf]
  %v546 = vld [vmem:[%s2 + $0xb0] sm:$0xf]
  %v547 = vld [vmem:[%s2 + $0xb4] sm:$0xf]
  %v548 = vld [vmem:[%s2 + $0xb8] sm:$0xf]
  %v549 = vld [vmem:[%s2 + $0xbc] sm:$0xf]
  %v550 = vld [vmem:[%s2 + $0xc0] sm:$0xf]
  %v551 = vld [vmem:[%s2 + $0xc4] sm:$0xf]
  %v552 = vld [vmem:[%s2 + $0xc8] sm:$0xf]
  %v553 = vld [vmem:[%s2 + $0xcc] sm:$0xf]
  %v554 = vld [vmem:[%s2 + $0xd0] sm:$0xf]
  %v555 = vld [vmem:[%s2 + $0xd4] sm:$0xf]
  %v556 = vld [vmem:[%s2 + $0xd8] sm:$0xf]
  %v557 = vld [vmem:[%s2 + $0xdc] sm:$0xf]
  %v558 = vld [vmem:[%s2 + $0xe0] sm:$0xf]
  %v559 = vld [vmem:[%s2 + $0xe4] sm:$0xf]
  %v560 = vld [vmem:[%s2 + $0xe8] sm:$0xf]
  %v561 = vld [vmem:[%s2 + $0xec] sm:$0xf]
  %v562 = vld [vmem:[%s2 + $0xf0] sm:$0xf]
  %v563 = vld [vmem:[%s2 + $0xf4] sm:$0xf]
  %v564 = vld [vmem:[%s2 + $0xf8] sm:$0xf]
  %v565 = vld [vmem:[%s2 + $0xfc] sm:$0xf]
  %v630 = vunpack.c.l.b16 %v502
  %v631 = vunpack.c.l.b16 %v503
  %v632 = vunpack.c.l.b16 %v504
  %v633 = vunpack.c.l.b16 %v505
  %v634 = vunpack.c.l.b16 %v506
  %v635 = vunpack.c.l.b16 %v507
  %v636 = vunpack.c.l.b16 %v508
  %v637 = vunpack.c.l.b16 %v509
  %v638 = vunpack.c.l.b16 %v510
  %v639 = vunpack.c.l.b16 %v511
  %v640 = vunpack.c.l.b16 %v512
  %v641 = vunpack.c.l.b16 %v513
  %v642 = vunpack.c.l.b16 %v514
  %v643 = vunpack.c.l.b16 %v515
  %v644 = vunpack.c.l.b16 %v516
  %v645 = vunpack.c.l.b16 %v517
  %v646 = vunpack.c.l.b16 %v518
  %v647 = vunpack.c.l.b16 %v519
  %v648 = vunpack.c.l.b16 %v520
  %v649 = vunpack.c.l.b16 %v521
  %v650 = vunpack.c.l.b16 %v522
  %v651 = vunpack.c.l.b16 %v523
  %v652 = vunpack.c.l.b16 %v524
  %v653 = vunpack.c.l.b16 %v525
  %v654 = vunpack.c.l.b16 %v526
  %v655 = vunpack.c.l.b16 %v527
  %v656 = vunpack.c.l.b16 %v528
  %v657 = vunpack.c.l.b16 %v529
  %v658 = vunpack.c.l.b16 %v530
  %v659 = vunpack.c.l.b16 %v531
  %v660 = vunpack.c.l.b16 %v532
  %v661 = vunpack.c.l.b16 %v533
  %v662 = vunpack.c.l.b16 %v534
  %v663 = vunpack.c.l.b16 %v535
  %v664 = vunpack.c.l.b16 %v536
  %v665 = vunpack.c.l.b16 %v537
  %v666 = vunpack.c.l.b16 %v538
  %v667 = vunpack.c.l.b16 %v539
  %v668 = vunpack.c.l.b16 %v540
  %v669 = vunpack.c.l.b16 %v541
  %v670 = vunpack.c.l.b16 %v542
  %v671 = vunpack.c.l.b16 %v543
  %v672 = vunpack.c.l.b16 %v544
  %v673 = vunpack.c.l.b16 %v545
  %v674 = vunpack.c.l.b16 %v546
  %v675 = vunpack.c.l.b16 %v547
  %v676 = vunpack.c.l.b16 %v548
  %v677 = vunpack.c.l.b16 %v549
  %v678 = vunpack.c.l.b16 %v550
  %v679 = vunpack.c.l.b16 %v551
  %v680 = vunpack.c.l.b16 %v552
  %v681 = vunpack.c.l.b16 %v553
  %v682 = vunpack.c.l.b16 %v554
  %v683 = vunpack.c.l.b16 %v555
  %v684 = vunpack.c.l.b16 %v556
  %v685 = vunpack.c.l.b16 %v557
  %v686 = vunpack.c.l.b16 %v558
  %v687 = vunpack.c.l.b16 %v559
  %v688 = vunpack.c.l.b16 %v560
  %v689 = vunpack.c.l.b16 %v561
  %v690 = vunpack.c.l.b16 %v562
  %v691 = vunpack.c.l.b16 %v563
  %v692 = vunpack.c.l.b16 %v564
  %v693 = vunpack.c.l.b16 %v565
  %v694 = vpack.c.b16 %v631, %v630
  %v695 = vpack.c.b16 %v633, %v632
  %v696 = vpack.c.b16 %v635, %v634
  %v697 = vpack.c.b16 %v637, %v636
  %v698 = vpack.c.b16 %v639, %v638
  %v699 = vpack.c.b16 %v641, %v640
  %v700 = vpack.c.b16 %v643, %v642
  %v701 = vpack.c.b16 %v645, %v644
  %v702 = vpack.c.b16 %v647, %v646
  %v703 = vpack.c.b16 %v649, %v648
  %v704 = vpack.c.b16 %v651, %v650
  %v705 = vpack.c.b16 %v653, %v652
  %v706 = vpack.c.b16 %v655, %v654
  %v707 = vpack.c.b16 %v657, %v656
  %v708 = vpack.c.b16 %v659, %v658
  %v709 = vpack.c.b16 %v661, %v660
  %v710 = vpack.c.b16 %v663, %v662
  %v711 = vpack.c.b16 %v665, %v664
  %v712 = vpack.c.b16 %v667, %v666
  %v713 = vpack.c.b16 %v669, %v668
  %v714 = vpack.c.b16 %v671, %v670
  %v715 = vpack.c.b16 %v673, %v672
  %v716 = vpack.c.b16 %v675, %v674
  %v717 = vpack.c.b16 %v677, %v676
  %v718 = vpack.c.b16 %v679, %v678
  %v719 = vpack.c.b16 %v681, %v680
  %v720 = vpack.c.b16 %v683, %v682
  %v721 = vpack.c.b16 %v685, %v684
  %v722 = vpack.c.b16 %v687, %v686
  %v723 = vpack.c.b16 %v689, %v688
  %v724 = vpack.c.b16 %v691, %v690
  %v725 = vpack.c.b16 %v693, %v692
  %758 = vmatprep.subr.bf16.mxu0 0
  %759 = vmatpush1.bf16.msra.mxu0 %v694
  %760 = vmatprep.subr.bf16.mxu0 0
  %761 = vmatpush1.bf16.msra.mxu0 %v695
  %762 = vmatprep.subr.bf16.mxu0 0
  %763 = vmatpush1.bf16.msra.mxu0 %v696
  %764 = vmatprep.subr.bf16.mxu0 0
  %765 = vmatpush1.bf16.msra.mxu0 %v697
  %766 = vmatprep.subr.bf16.mxu0 0
  %767 = vmatpush1.bf16.msra.mxu0 %v698
  %768 = vmatprep.subr.bf16.mxu0 0
  %769 = vmatpush1.bf16.msra.mxu0 %v699
  %770 = vmatprep.subr.bf16.mxu0 0
  %771 = vmatpush1.bf16.msra.mxu0 %v700
  %772 = vmatprep.subr.bf16.mxu0 0
  %773 = vmatpush1.bf16.msra.mxu0 %v701
  %774 = vmatprep.subr.bf16.mxu0 0
  %775 = vmatpush1.bf16.msra.mxu0 %v702
  %776 = vmatprep.subr.bf16.mxu0 0
  %777 = vmatpush1.bf16.msra.mxu0 %v703
  %778 = vmatprep.subr.bf16.mxu0 0
  %779 = vmatpush1.bf16.msra.mxu0 %v704
  %780 = vmatprep.subr.bf16.mxu0 0
  %781 = vmatpush1.bf16.msra.mxu0 %v705
  %782 = vmatprep.subr.bf16.mxu0 0
  %783 = vmatpush1.bf16.msra.mxu0 %v706
  %784 = vmatprep.subr.bf16.mxu0 0
  %785 = vmatpush1.bf16.msra.mxu0 %v707
  %786 = vmatprep.subr.bf16.mxu0 0
  %787 = vmatpush1.bf16.msra.mxu0 %v708
  %788 = vmatprep.subr.bf16.mxu0 0
  %789 = vmatpush1.bf16.msra.mxu0 %v709
  %790 = vmatprep.mubr.bf16.mxu0 %v499
  %791 = vmatmul.mubr.bf16.gmra.mrb[0].mxu0 %v498
  %v792 = vpop.f32.mrb[0].mxu0
  %v793 = vadd.f32 0.0, %v792
  %v794 = vpop.f32.mrb[0].mxu0
  %v795 = vpop.f32.mrb[0].mxu0
  %v796 = vpop.f32.mrb[0].mxu0
  %797 = vdwg.mxu0
  %798 = vmatprep.subr.bf16.mxu0 0
  %799 = vmatpush1.bf16.msra.mxu0 %v710
  %800 = vmatprep.subr.bf16.mxu0 0
  %801 = vmatpush1.bf16.msra.mxu0 %v711
  %802 = vmatprep.subr.bf16.mxu0 0
  %803 = vmatpush1.bf16.msra.mxu0 %v712
  %804 = vmatprep.subr.bf16.mxu0 0
  %805 = vmatpush1.bf16.msra.mxu0 %v713
  %806 = vmatprep.subr.bf16.mxu0 0
  %807 = vmatpush1.bf16.msra.mxu0 %v714
  %808 = vmatprep.subr.bf16.mxu0 0
  %809 = vmatpush1.bf16.msra.mxu0 %v715
  %810 = vmatprep.subr.bf16.mxu0 0
  %811 = vmatpush1.bf16.msra.mxu0 %v716
  %812 = vmatprep.subr.bf16.mxu0 0
  %813 = vmatpush1.bf16.msra.mxu0 %v717
  %814 = vmatprep.subr.bf16.mxu0 0
  %815 = vmatpush1.bf16.msra.mxu0 %v718
  %816 = vmatprep.subr.bf16.mxu0 0
  %817 = vmatpush1.bf16.msra.mxu0 %v719
  %818 = vmatprep.subr.bf16.mxu0 0
  %819 = vmatpush1.bf16.msra.mxu0 %v720
  %820 = vmatprep.subr.bf16.mxu0 0
  %821 = vmatpush1.bf16.msra.mxu0 %v721
  %822 = vmatprep.subr.bf16.mxu0 0
  %823 = vmatpush1.bf16.msra.mxu0 %v722
  %824 = vmatprep.subr.bf16.mxu0 0
  %825 = vmatpush1.bf16.msra.mxu0 %v723
  %826 = vmatprep.subr.bf16.mxu0 0
  %827 = vmatpush1.bf16.msra.mxu0 %v724
  %828 = vmatprep.subr.bf16.mxu0 0
  %829 = vmatpush1.bf16.msra.mxu0 %v725
  %830 = vmatprep.mubr.bf16.mxu0 %v501
  %831 = vmatmul.mubr.bf16.gmra.mrb[0].mxu0 %v500
  %v832 = vpop.f32.mrb[0].mxu0
  %v833 = vadd.f32 %v793, %v832
  %v834 = vpop.f32.mrb[0].mxu0
  %v835 = vpop.f32.mrb[0].mxu0
  %v836 = vpop.f32.mrb[0].mxu0
  %837 = vdwg.mxu0
  %v838 = vadd.f32 %v489, %v833
  %v839 = vld [vmem:[%s4 + $0x48] sm:$0xff]
  %v841 = vsel %vm89, %v838, 0
  %843 = vmatprep.subr.mxu0 0.0
  %844 = vmatpush1.msra.mxu0 %v225
  %845 = vmatprep.subr.mxu0 0.0
  %846 = vmatpush1.msra.mxu0 %v228
  %847 = vmatprep.subr.mxu0 0.0
  %848 = vmatpush1.msra.mxu0 %v233
  %849 = vmatprep.subr.mxu0 0.0
  %850 = vmatpush1.msra.mxu0 %v236
  %851 = vmatprep.subr.mxu0 0.0
  %852 = vmatpush1.msra.mxu0 %v241
  %853 = vmatprep.subr.mxu0 0.0
  %854 = vmatpush1.msra.mxu0 %v244
  %855 = vmatprep.subr.mxu0 0.0
  %856 = vmatpush1.msra.mxu0 %v249
  %857 = vmatprep.subr.mxu0 0.0
  %858 = vmatpush1.msra.mxu0 %v252
  %859 = vmatprep.subr.mxu0 0.0
  %860 = vmatpush1.msra.mxu0 0.0
  %861 = vmatprep.subr.mxu0 0.0
  %862 = vmatpush1.msra.mxu0 0.0
  %863 = vmatprep.subr.mxu0 0.0
  %864 = vmatpush1.msra.mxu0 0.0
  %865 = vmatprep.subr.mxu0 0.0
  %866 = vmatpush1.msra.mxu0 0.0
  %867 = vmatprep.subr.mxu0 0.0
  %868 = vmatpush1.msra.mxu0 0.0
  %869 = vmatprep.subr.mxu0 0.0
  %870 = vmatpush1.msra.mxu0 0.0
  %871 = vmatprep.subr.mxu0 0.0
  %872 = vmatpush1.msra.mxu0 0.0
  %873 = vmatprep.subr.mxu0 0.0
  %874 = vmatpush1.msra.mxu0 0.0
  %875 = vmatprep.subr.mxu0 0.0
  %876 = vmatpush1.msra.mxu0 0.0
  %877 = vmatprep.subr.mxu0 0.0
  %878 = vmatpush1.msra.mxu0 0.0
  %879 = vmatprep.subr.mxu0 0.0
  %880 = vmatpush1.msra.mxu0 0.0
  %881 = vmatprep.subr.mxu0 0.0
  %882 = vmatpush1.msra.mxu0 0.0
  %883 = vmatprep.subr.mxu0 0.0
  %884 = vmatpush1.msra.mxu0 0.0
  %885 = vmatprep.subr.mxu0 0.0
  %886 = vmatpush1.msra.mxu0 0.0
  %887 = vmatprep.subr.mxu0 0.0
  %888 = vmatpush1.msra.mxu0 0.0
  %889 = vmatprep.subr.mxu0 0.0
  %890 = vmatpush1.msra.mxu0 0.0
  %891 = vmatprep.subr.mxu0 0.0
  %892 = vmatpush1.msra.mxu0 0.0
  %893 = vmatprep.subr.mxu0 0.0
  %894 = vmatpush1.msra.mxu0 0.0
  %895 = vmatprep.subr.mxu0 0.0
  %896 = vmatpush1.msra.mxu0 0.0
  %897 = vmatprep.subr.mxu0 0.0
  %898 = vmatpush1.msra.mxu0 0.0
  %899 = vmatprep.subr.mxu0 0.0
  %900 = vmatpush1.msra.mxu0 0.0
  %901 = vmatprep.subr.mxu0 0.0
  %902 = vmatpush1.msra.mxu0 0.0
  %903 = vmatprep.subr.mxu0 0.0
  %904 = vmatpush1.msra.mxu0 0.0
  %905 = vmatprep.subr.mxu0 0.0
  %906 = vmatpush1.msra.mxu0 0.0
  %907 = vmatprep.mubr.f32.mxu0 0.0
  %908 = vmatmul.mubr.f32.gmra.mrb[0].mxu0 %v841
  %v909 = vpop.f32.mrb[0].mxu0
  %v910 = vadd.f32 %v839, %v909
  %v911 = vpop.f32.mrb[0].mxu0
  %912 = vdwg.mxu0
  %v913 = vadd.f32 %v910, %v24
  %v914 = vld [vmem:[%s4 + $0x60] sm:$0xff]
  %v915 = vld [vmem:[%s4 + $0x68] sm:$0xff]
  %v916 = vsel %vm89, %v913, 0.0
  %917 = vadd.xlane.f32.xlu0 %v916
  %v918 = vpop.xlane.xlu0 %917
  %v919 = vmul.f32 %v918, 0.015625
  %v920 = vsub.f32 %v913, %v919
  %v921 = vmul.f32 %v920, %v920
  %v922 = vsel %vm89, %v921, 0.0
  %923 = vadd.xlane.f32.xlu0 %v922
  %v924 = vpop.xlane.xlu0 %923
  %v925 = vmul.f32 %v924, 0.015625
  %v926 = vadd.f32 %v925, 1e-05
  %v927 = vrsqrt.pop %v926
  %v928 = vmul.f32 %v920, %v927
  %v929 = vmul.f32 %v928, %v914
  %v930 = vadd.f32 %v929, %v915
  %v931 = vpack.c.bf16 %v930, %v930
  %v932 = vld [vmem:[%s1 + $0x40] sm:$0xff]
  %v933 = vld [vmem:[%s1 + $0x48] sm:$0xff]
  %v934 = vld [vmem:[%s1 + $0x50] sm:$0xff]
  %v935 = vld [vmem:[%s1 + $0x58] sm:$0xff]
  %v936 = vld [vmem:[%s1 + $0x60] sm:$0xff]
  %v937 = vld [vmem:[%s1 + $0x68] sm:$0xff]
  %v938 = vld [vmem:[%s1 + $0x70] sm:$0xff]
  %v939 = vld [vmem:[%s1 + $0x78] sm:$0xff]
  %v940 = vld [vmem:[%s3 + $0x10] sm:$0xff]
  %v941 = vld [vmem:[%s3 + $0x18] sm:$0xff]
  %v950 = vunpack.c.l.b16 %v932
  %v951 = vunpack.c.h.b16 %v932
  %v952 = vunpack.c.l.b16 %v933
  %v953 = vunpack.c.h.b16 %v933
  %v954 = vunpack.c.l.b16 %v934
  %v955 = vunpack.c.h.b16 %v934
  %v956 = vunpack.c.l.b16 %v935
  %v957 = vunpack.c.h.b16 %v935
  %v958 = vunpack.c.l.b16 %v936
  %v959 = vunpack.c.h.b16 %v936
  %v960 = vunpack.c.l.b16 %v937
  %v961 = vunpack.c.h.b16 %v937
  %v962 = vunpack.c.l.b16 %v938
  %v963 = vunpack.c.h.b16 %v938
  %v964 = vunpack.c.l.b16 %v939
  %v965 = vunpack.c.h.b16 %v939
  %v966 = vpack.c.b16 %v952, %v950
  %v967 = vpack.c.b16 %v953, %v951
  %v968 = vpack.c.b16 %v956, %v954
  %v969 = vpack.c.b16 %v957, %v955
  %v970 = vpack.c.b16 %v960, %v958
  %v971 = vpack.c.b16 %v961, %v959
  %v972 = vpack.c.b16 %v964, %v962
  %v973 = vpack.c.b16 %v965, %v963
  %v983 = vsel %vm89, %v931, 0
  %985 = vmatprep.subr.bf16.mxu0 %v967
  %986 = vmatpush1.bf16.msra.mxu0 %v966
  %987 = vmatprep.subr.bf16.mxu0 %v969
  %988 = vmatpush1.bf16.msra.mxu0 %v968
  %989 = vmatprep.subr.bf16.mxu0 %v971
  %990 = vmatpush1.bf16.msra.mxu0 %v970
  %991 = vmatprep.subr.bf16.mxu0 %v973
  %992 = vmatpush1.bf16.msra.mxu0 %v972
  %993 = vmatprep.subr.bf16.mxu0 0
  %994 = vmatpush1.bf16.msra.mxu0 0
  %995 = vmatprep.subr.bf16.mxu0 0
  %996 = vmatpush1.bf16.msra.mxu0 0
  %997 = vmatprep.subr.bf16.mxu0 0
  %998 = vmatpush1.bf16.msra.mxu0 0
  %999 = vmatprep.subr.bf16.mxu0 0
  %1000 = vmatpush1.bf16.msra.mxu0 0
  %1001 = vmatprep.subr.bf16.mxu0 0
  %1002 = vmatpush1.bf16.msra.mxu0 0
  %1003 = vmatprep.subr.bf16.mxu0 0
  %1004 = vmatpush1.bf16.msra.mxu0 0
  %1005 = vmatprep.subr.bf16.mxu0 0
  %1006 = vmatpush1.bf16.msra.mxu0 0
  %1007 = vmatprep.subr.bf16.mxu0 0
  %1008 = vmatpush1.bf16.msra.mxu0 0
  %1009 = vmatprep.subr.bf16.mxu0 0
  %1010 = vmatpush1.bf16.msra.mxu0 0
  %1011 = vmatprep.subr.bf16.mxu0 0
  %1012 = vmatpush1.bf16.msra.mxu0 0
  %1013 = vmatprep.subr.bf16.mxu0 0
  %1014 = vmatpush1.bf16.msra.mxu0 0
  %1015 = vmatprep.subr.bf16.mxu0 0
  %1016 = vmatpush1.bf16.msra.mxu0 0
  %1017 = vmatprep.mubr.bf16.mxu0 0
  %1018 = vmatmul.mubr.bf16.gmra.mrb[0].mxu0 %v983
  %v1019 = vpop.f32.mrb[0].mxu0
  %v1020 = vadd.f32 %v940, %v1019
  %v1021 = vpop.f32.mrb[0].mxu0
  %v1022 = vadd.f32 %v941, %v1021
  %v1023 = vpop.f32.mrb[0].mxu0
  %v1024 = vpop.f32.mrb[0].mxu0
  %1025 = vdwg.mxu0
  %v1026 = vmul.f32 %v1022, %v25
  %v1027 = vmul.f32 %v1022, %v26
  %v1028 = vmul.f32 %v1022, %v27
  %v1029 = vmul.f32 %v1022, %v28
  %v1030 = vmul.f32 %v1022, %v29
  %v1031 = vmul.f32 %v1022, %v30
  %v1032 = vmul.f32 %v1022, %v31
  %v1033 = vmul.f32 %v1022, %v32
  %v1034 = vpack.c.bf16 %v1027, %v1026
  %v1035 = vpack.c.bf16 %v1029, %v1028
  %v1036 = vpack.c.bf16 %v1031, %v1030
  %v1037 = vpack.c.bf16 %v1033, %v1032
  %v1038 = vld [vmem:[%s2 + $0x2a0] sm:$0xf]
  %v1039 = vld [vmem:[%s2 + $0x2a4] sm:$0xf]
  %v1040 = vld [vmem:[%s2 + $0x2a8] sm:$0xf]
  %v1041 = vld [vmem:[%s2 + $0x2ac] sm:$0xf]
  %v1042 = vld [vmem:[%s2 + $0x2b0] sm:$0xf]
  %v1043 = vld [vmem:[%s2 + $0x2b4] sm:$0xf]
  %v1044 = vld [vmem:[%s2 + $0x2b8] sm:$0xf]
  %v1045 = vld [vmem:[%s2 + $0x2bc] sm:$0xf]
  %v1054 = vunpack.c.l.b16 %v1038
  %v1055 = vunpack.c.l.b16 %v1039
  %v1056 = vunpack.c.l.b16 %v1040
  %v1057 = vunpack.c.l.b16 %v1041
  %v1058 = vunpack.c.l.b16 %v1042
  %v1059 = vunpack.c.l.b16 %v1043
  %v1060 = vunpack.c.l.b16 %v1044
  %v1061 = vunpack.c.l.b16 %v1045
  %v1062 = vpack.c.b16 %v1055, %v1054
  %v1063 = vpack.c.b16 %v1057, %v1056
  %v1064 = vpack.c.b16 %v1059, %v1058
  %v1065 = vpack.c.b16 %v1061, %v1060
  %v1071 = vsel %vm89, %v1034, 0
  %v1074 = vsel %vm89, %v1035, 0
  %v1077 = vsel %vm89, %v1036, 0
  %v1080 = vsel %vm89, %v1037, 0
  %1082 = vmatprep.subr.bf16.mxu0 0
  %1083 = vmatpush1.bf16.msra.mxu0 %v1062
  %1084 = vmatprep.subr.bf16.mxu0 0
  %1085 = vmatpush1.bf16.msra.mxu0 %v1063
  %1086 = vmatprep.subr.bf16.mxu0 0
  %1087 = vmatpush1.bf16.msra.mxu0 %v1064
  %1088 = vmatprep.subr.bf16.mxu0 0
  %1089 = vmatpush1.bf16.msra.mxu0 %v1065
  %1090 = vmatprep.subr.bf16.mxu0 0
  %1091 = vmatpush1.bf16.msra.mxu0 0
  %1092 = vmatprep.subr.bf16.mxu0 0
  %1093 = vmatpush1.bf16.msra.mxu0 0
  %1094 = vmatprep.subr.bf16.mxu0 0
  %1095 = vmatpush1.bf16.msra.mxu0 0
  %1096 = vmatprep.subr.bf16.mxu0 0
  %1097 = vmatpush1.bf16.msra.mxu0 0
  %1098 = vmatprep.subr.bf16.mxu0 0
  %1099 = vmatpush1.bf16.msra.mxu0 0
  %1100 = vmatprep.subr.bf16.mxu0 0
  %1101 = vmatpush1.bf16.msra.mxu0 0
  %1102 = vmatprep.subr.bf16.mxu0 0
  %1103 = vmatpush1.bf16.msra.mxu0 0
  %1104 = vmatprep.subr.bf16.mxu0 0
  %1105 = vmatpush1.bf16.msra.mxu0 0
  %1106 = vmatprep.subr.bf16.mxu0 0
  %1107 = vmatpush1.bf16.msra.mxu0 0
  %1108 = vmatprep.subr.bf16.mxu0 0
  %1109 = vmatpush1.bf16.msra.mxu0 0
  %1110 = vmatprep.subr.bf16.mxu0 0
  %1111 = vmatpush1.bf16.msra.mxu0 0
  %1112 = vmatprep.subr.bf16.mxu0 0
  %1113 = vmatpush1.bf16.msra.mxu0 0
  %1114 = vmatprep.mubr.bf16.mxu0 0
  %1115 = vmatmul.mubr.bf16.gmra.mrb[0].mxu0 %v1071
  %v1116 = vpop.f32.mrb[0].mxu0
  %v1117 = vadd.f32 0.0, %v1116
  %v1118 = vpop.f32.mrb[0].mxu0
  %v1119 = vpop.f32.mrb[0].mxu0
  %v1120 = vadd.f32 0.0, %v1119
  %v1121 = vpop.f32.mrb[0].mxu0
  %1122 = vmatprep.mubr.bf16.mxu0 0
  %1123 = vmatmul.mubr.bf16.gmra.mrb[0].mxu0 %v1074
  %v1124 = vpop.f32.mrb[0].mxu0
  %v1125 = vadd.f32 0.0, %v1124
  %v1126 = vpop.f32.mrb[0].mxu0
  %v1127 = vpop.f32.mrb[0].mxu0
  %v1128 = vadd.f32 0.0, %v1127
  %v1129 = vpop.f32.mrb[0].mxu0
  %1130 = vmatprep.mubr.bf16.mxu0 0
  %1131 = vmatmul.mubr.bf16.gmra.mrb[0].mxu0 %v1077
  %v1132 = vpop.f32.mrb[0].mxu0
  %v1133 = vadd.f32 0.0, %v1132
  %v1134 = vpop.f32.mrb[0].mxu0
  %v1135 = vpop.f32.mrb[0].mxu0
  %v1136 = vadd.f32 0.0, %v1135
  %v1137 = vpop.f32.mrb[0].mxu0
  %1138 = vmatprep.mubr.bf16.mxu0 0
  %1139 = vmatmul.mubr.bf16.gmra.mrb[0].mxu0 %v1080
  %v1140 = vpop.f32.mrb[0].mxu0
  %v1141 = vadd.f32 0.0, %v1140
  %v1142 = vpop.f32.mrb[0].mxu0
  %v1143 = vpop.f32.mrb[0].mxu0
  %v1144 = vadd.f32 0.0, %v1143
  %v1145 = vpop.f32.mrb[0].mxu0
  %1146 = vdwg.mxu0
  %v1147 = vmul.f32 %v1020, %v264
  %v1148 = vmul.f32 %v1020, %v266
  %v1149 = vmul.f32 %v1020, %v268
  %v1150 = vmul.f32 %v1020, %v270
  %v1151 = vmul.f32 %v1020, %v272
  %v1152 = vmul.f32 %v1020, %v274
  %v1153 = vmul.f32 %v1020, %v276
  %v1154 = vmul.f32 %v1020, %v278
  %1163 = vrot.lane.b32.xlu0 %v1147, 64
  %v1164 = vpop.permute.xlu0 %1163
  %1165 = vrot.lane.b32.xlu0 %v1148, 64
  %v1166 = vpop.permute.xlu0 %1165
  %1167 = vrot.lane.b32.xlu0 %v1149, 64
  %v1168 = vpop.permute.xlu0 %1167
  %1169 = vrot.lane.b32.xlu0 %v1150, 64
  %v1170 = vpop.permute.xlu0 %1169
  %1171 = vrot.lane.b32.xlu0 %v1151, 64
  %v1172 = vpop.permute.xlu0 %1171
  %1173 = vrot.lane.b32.xlu0 %v1152, 64
  %v1174 = vpop.permute.xlu0 %1173
  %1175 = vrot.lane.b32.xlu0 %v1153, 64
  %v1176 = vpop.permute.xlu0 %1175
  %1177 = vrot.lane.b32.xlu0 %v1154, 64
  %v1178 = vpop.permute.xlu0 %1177
  %v1180 = vsel %vm89, %v1020, 0
  %v1182 = vsel %vm89, %v1164, 0
  %v1184 = vsel %vm89, %v1166, 0
  %v1186 = vsel %vm89, %v1168, 0
  %v1188 = vsel %vm89, %v1170, 0
  %v1190 = vsel %vm89, %v1172, 0
  %v1192 = vsel %vm89, %v1174, 0
  %v1194 = vsel %vm89, %v1176, 0
  %v1196 = vsel %vm89, %v1178, 0
  %1198 = vmatprep.subr.mxu0 0.0
  %1199 = vmatpush1.xpose.msra.mxu0 %v1182
  %1200 = vmatprep.subr.mxu0 0.0
  %1201 = vmatpush1.xpose.msra.mxu0 %v1184
  %1202 = vmatprep.subr.mxu0 0.0
  %1203 = vmatpush1.xpose.msra.mxu0 %v1186
  %1204 = vmatprep.subr.mxu0 0.0
  %1205 = vmatpush1.xpose.msra.mxu0 %v1188
  %1206 = vmatprep.subr.mxu0 0.0
  %1207 = vmatpush1.xpose.msra.mxu0 %v1190
  %1208 = vmatprep.subr.mxu0 0.0
  %1209 = vmatpush1.xpose.msra.mxu0 %v1192
  %1210 = vmatprep.subr.mxu0 0.0
  %1211 = vmatpush1.xpose.msra.mxu0 %v1194
  %1212 = vmatprep.subr.mxu0 0.0
  %1213 = vmatpush1.xpose.msra.mxu0 %v1196
  %1214 = vmatprep.subr.mxu0 0.0
  %1215 = vmatpush1.xpose.msra.mxu0 0.0
  %1216 = vmatprep.subr.mxu0 0.0
  %1217 = vmatpush1.xpose.msra.mxu0 0.0
  %1218 = vmatprep.subr.mxu0 0.0
  %1219 = vmatpush1.xpose.msra.mxu0 0.0
  %1220 = vmatprep.subr.mxu0 0.0
  %1221 = vmatpush1.xpose.msra.mxu0 0.0
  %1222 = vmatprep.subr.mxu0 0.0
  %1223 = vmatpush1.xpose.msra.mxu0 0.0
  %1224 = vmatprep.subr.mxu0 0.0
  %1225 = vmatpush1.xpose.msra.mxu0 0.0
  %1226 = vmatprep.subr.mxu0 0.0
  %1227 = vmatpush1.xpose.msra.mxu0 0.0
  %1228 = vmatprep.subr.mxu0 0.0
  %1229 = vmatpush1.xpose.msra.mxu0 0.0
  %1230 = vmatprep.subr.mxu0 0.0
  %1231 = vmatpush1.xpose.msra.mxu0 0.0
  %1232 = vmatprep.subr.mxu0 0.0
  %1233 = vmatpush1.xpose.msra.mxu0 0.0
  %1234 = vmatprep.subr.mxu0 0.0
  %1235 = vmatpush1.xpose.msra.mxu0 0.0
  %1236 = vmatprep.subr.mxu0 0.0
  %1237 = vmatpush1.xpose.msra.mxu0 0.0
  %1238 = vmatprep.subr.mxu0 0.0
  %1239 = vmatpush1.xpose.msra.mxu0 0.0
  %1240 = vmatprep.subr.mxu0 0.0
  %1241 = vmatpush1.xpose.msra.mxu0 0.0
  %1242 = vmatprep.subr.mxu0 0.0
  %1243 = vmatpush1.xpose.msra.mxu0 0.0
  %1244 = vmatprep.subr.mxu0 0.0
  %1245 = vmatpush1.xpose.msra.mxu0 0.0
  %1246 = vmatprep.subr.mxu0 0.0
  %1247 = vmatpush1.xpose.msra.mxu0 0.0
  %1248 = vmatprep.subr.mxu0 0.0
  %1249 = vmatpush1.xpose.msra.mxu0 0.0
  %1250 = vmatprep.subr.mxu0 0.0
  %1251 = vmatpush1.xpose.msra.mxu0 0.0
  %1252 = vmatprep.subr.mxu0 0.0
  %1253 = vmatpush1.xpose.msra.mxu0 0.0
  %1254 = vmatprep.subr.mxu0 0.0
  %1255 = vmatpush1.xpose.msra.mxu0 0.0
  %1256 = vmatprep.subr.mxu0 0.0
  %1257 = vmatpush1.xpose.msra.mxu0 0.0
  %1258 = vmatprep.subr.mxu0 0.0
  %1259 = vmatpush1.xpose.msra.mxu0 0.0
  %1260 = vmatprep.subr.mxu0 0.0
  %1261 = vmatpush1.xpose.msra.mxu0 0.0
  %1262 = vmatprep.mubr.f32.mxu0 0.0
  %1263 = vmatmul.mubr.f32.gmra.mrb[0].mxu0 %v1180
  %v1264 = vpop.f32.mrb[0].mxu0
  %v1265 = vadd.f32 %v33, %v1264
  %v1266 = vpop.f32.mrb[0].mxu0
  %1267 = vdwg.mxu0
  %v1268 = vsel %vm89, %v1265, -inf
  %1269 = vmax.xlane.f32.xlu0 %v1268
  %v1270 = vpop.xlane.xlu0 %1269
  %v1271 = vsub.f32 %v1265, %v1270
  %v1272 = vmul.f32 %v1271, 1.442695
  %v1273 = vpow.pop %v1272
  %v1275 = vsel %vm89, %v1273, 0
  %1277 = vmatprep.subr.mxu0 0.0
  %1278 = vmatpush1.msra.mxu0 %v25
  %1279 = vmatprep.subr.mxu0 0.0
  %1280 = vmatpush1.msra.mxu0 %v26
  %1281 = vmatprep.subr.mxu0 0.0
  %1282 = vmatpush1.msra.mxu0 %v27
  %1283 = vmatprep.subr.mxu0 0.0
  %1284 = vmatpush1.msra.mxu0 %v28
  %1285 = vmatprep.subr.mxu0 0.0
  %1286 = vmatpush1.msra.mxu0 %v29
  %1287 = vmatprep.subr.mxu0 0.0
  %1288 = vmatpush1.msra.mxu0 %v30
  %1289 = vmatprep.subr.mxu0 0.0
  %1290 = vmatpush1.msra.mxu0 %v31
  %1291 = vmatprep.subr.mxu0 0.0
  %1292 = vmatpush1.msra.mxu0 %v32
  %1293 = vmatprep.subr.mxu0 0.0
  %1294 = vmatpush1.msra.mxu0 0.0
  %1295 = vmatprep.subr.mxu0 0.0
  %1296 = vmatpush1.msra.mxu0 0.0
  %1297 = vmatprep.subr.mxu0 0.0
  %1298 = vmatpush1.msra.mxu0 0.0
  %1299 = vmatprep.subr.mxu0 0.0
  %1300 = vmatpush1.msra.mxu0 0.0
  %1301 = vmatprep.subr.mxu0 0.0
  %1302 = vmatpush1.msra.mxu0 0.0
  %1303 = vmatprep.subr.mxu0 0.0
  %1304 = vmatpush1.msra.mxu0 0.0
  %1305 = vmatprep.subr.mxu0 0.0
  %1306 = vmatpush1.msra.mxu0 0.0
  %1307 = vmatprep.subr.mxu0 0.0
  %1308 = vmatpush1.msra.mxu0 0.0
  %1309 = vmatprep.subr.mxu0 0.0
  %1310 = vmatpush1.msra.mxu0 0.0
  %1311 = vmatprep.subr.mxu0 0.0
  %1312 = vmatpush1.msra.mxu0 0.0
  %1313 = vmatprep.subr.mxu0 0.0
  %1314 = vmatpush1.msra.mxu0 0.0
  %1315 = vmatprep.subr.mxu0 0.0
  %1316 = vmatpush1.msra.mxu0 0.0
  %1317 = vmatprep.subr.mxu0 0.0
  %1318 = vmatpush1.msra.mxu0 0.0
  %1319 = vmatprep.subr.mxu0 0.0
  %1320 = vmatpush1.msra.mxu0 0.0
  %1321 = vmatprep.subr.mxu0 0.0
  %1322 = vmatpush1.msra.mxu0 0.0
  %1323 = vmatprep.subr.mxu0 0.0
  %1324 = vmatpush1.msra.mxu0 0.0
  %1325 = vmatprep.subr.mxu0 0.0
  %1326 = vmatpush1.msra.mxu0 0.0
  %1327 = vmatprep.subr.mxu0 0.0
  %1328 = vmatpush1.msra.mxu0 0.0
  %1329 = vmatprep.subr.mxu0 0.0
  %1330 = vmatpush1.msra.mxu0 0.0
  %1331 = vmatprep.subr.mxu0 0.0
  %1332 = vmatpush1.msra.mxu0 0.0
  %1333 = vmatprep.subr.mxu0 0.0
  %1334 = vmatpush1.msra.mxu0 0.0
  %1335 = vmatprep.subr.mxu0 0.0
  %1336 = vmatpush1.msra.mxu0 0.0
  %1337 = vmatprep.subr.mxu0 0.0
  %1338 = vmatpush1.msra.mxu0 0.0
  %1339 = vmatprep.subr.mxu0 0.0
  %1340 = vmatpush1.msra.mxu0 0.0
  %1341 = vmatprep.mubr.f32.mxu0 0.0
  %1342 = vmatmul.mubr.f32.gmra.mrb[0].mxu0 %v1275
  %v1343 = vpop.f32.mrb[0].mxu0
  %v1344 = vadd.f32 0.0, %v1343
  %v1345 = vpop.f32.mrb[0].mxu0
  %1346 = vdwg.mxu0
  %v1347 = vmax.f32 %v1344, 1e-30
  %v1348 = vrcp.pop %v1347
  %v1349 = vmul.f32 %v1273, %v1348
  %1350 = vrot.lane.b32.xlu0 %v1020, 64
  %v1351 = vpop.permute.xlu0 %1350
  %v1353 = vsel %vm89, %v1020, %v1351
  %v1354 = vmul.f32 %v1353, %v34
  %v1355 = vmul.f32 %v1353, %v35
  %v1356 = vmul.f32 %v1353, %v36
  %v1357 = vmul.f32 %v1353, %v37
  %v1358 = vpack.c.bf16 %v1354, %v1354
  %v1359 = vpack.c.bf16 %v1355, %v1355
  %v1360 = vpack.c.bf16 %v1356, %v1356
  %v1361 = vpack.c.bf16 %v1357, %v1357
  %v1362 = vld [vmem:[%s2 + $0x100] sm:$0xf]
  %v1363 = vld [vmem:[%s2 + $0x104] sm:$0xf]
  %v1364 = vld [vmem:[%s2 + $0x108] sm:$0xf]
  %v1365 = vld [vmem:[%s2 + $0x10c] sm:$0xf]
  %v1366 = vld [vmem:[%s2 + $0x110] sm:$0xf]
  %v1367 = vld [vmem:[%s2 + $0x114] sm:$0xf]
  %v1368 = vld [vmem:[%s2 + $0x118] sm:$0xf]
  %v1369 = vld [vmem:[%s2 + $0x11c] sm:$0xf]
  %v1370 = vld [vmem:[%s2 + $0x120] sm:$0xf]
  %v1371 = vld [vmem:[%s2 + $0x124] sm:$0xf]
  %v1372 = vld [vmem:[%s2 + $0x128] sm:$0xf]
  %v1373 = vld [vmem:[%s2 + $0x12c] sm:$0xf]
  %v1374 = vld [vmem:[%s2 + $0x130] sm:$0xf]
  %v1375 = vld [vmem:[%s2 + $0x134] sm:$0xf]
  %v1376 = vld [vmem:[%s2 + $0x138] sm:$0xf]
  %v1377 = vld [vmem:[%s2 + $0x13c] sm:$0xf]
  %v1378 = vld [vmem:[%s2 + $0x140] sm:$0xf]
  %v1379 = vld [vmem:[%s2 + $0x144] sm:$0xf]
  %v1380 = vld [vmem:[%s2 + $0x148] sm:$0xf]
  %v1381 = vld [vmem:[%s2 + $0x14c] sm:$0xf]
  %v1382 = vld [vmem:[%s2 + $0x150] sm:$0xf]
  %v1383 = vld [vmem:[%s2 + $0x154] sm:$0xf]
  %v1384 = vld [vmem:[%s2 + $0x158] sm:$0xf]
  %v1385 = vld [vmem:[%s2 + $0x15c] sm:$0xf]
  %v1386 = vld [vmem:[%s2 + $0x160] sm:$0xf]
  %v1387 = vld [vmem:[%s2 + $0x164] sm:$0xf]
  %v1388 = vld [vmem:[%s2 + $0x168] sm:$0xf]
  %v1389 = vld [vmem:[%s2 + $0x16c] sm:$0xf]
  %v1390 = vld [vmem:[%s2 + $0x170] sm:$0xf]
  %v1391 = vld [vmem:[%s2 + $0x174] sm:$0xf]
  %v1392 = vld [vmem:[%s2 + $0x178] sm:$0xf]
  %v1393 = vld [vmem:[%s2 + $0x17c] sm:$0xf]
  %v1394 = vld [vmem:[%s2 + $0x180] sm:$0xf]
  %v1395 = vld [vmem:[%s2 + $0x184] sm:$0xf]
  %v1396 = vld [vmem:[%s2 + $0x188] sm:$0xf]
  %v1397 = vld [vmem:[%s2 + $0x18c] sm:$0xf]
  %v1398 = vld [vmem:[%s2 + $0x190] sm:$0xf]
  %v1399 = vld [vmem:[%s2 + $0x194] sm:$0xf]
  %v1400 = vld [vmem:[%s2 + $0x198] sm:$0xf]
  %v1401 = vld [vmem:[%s2 + $0x19c] sm:$0xf]
  %v1402 = vld [vmem:[%s2 + $0x1a0] sm:$0xf]
  %v1403 = vld [vmem:[%s2 + $0x1a4] sm:$0xf]
  %v1404 = vld [vmem:[%s2 + $0x1a8] sm:$0xf]
  %v1405 = vld [vmem:[%s2 + $0x1ac] sm:$0xf]
  %v1406 = vld [vmem:[%s2 + $0x1b0] sm:$0xf]
  %v1407 = vld [vmem:[%s2 + $0x1b4] sm:$0xf]
  %v1408 = vld [vmem:[%s2 + $0x1b8] sm:$0xf]
  %v1409 = vld [vmem:[%s2 + $0x1bc] sm:$0xf]
  %v1410 = vld [vmem:[%s2 + $0x1c0] sm:$0xf]
  %v1411 = vld [vmem:[%s2 + $0x1c4] sm:$0xf]
  %v1412 = vld [vmem:[%s2 + $0x1c8] sm:$0xf]
  %v1413 = vld [vmem:[%s2 + $0x1cc] sm:$0xf]
  %v1414 = vld [vmem:[%s2 + $0x1d0] sm:$0xf]
  %v1415 = vld [vmem:[%s2 + $0x1d4] sm:$0xf]
  %v1416 = vld [vmem:[%s2 + $0x1d8] sm:$0xf]
  %v1417 = vld [vmem:[%s2 + $0x1dc] sm:$0xf]
  %v1418 = vld [vmem:[%s2 + $0x1e0] sm:$0xf]
  %v1419 = vld [vmem:[%s2 + $0x1e4] sm:$0xf]
  %v1420 = vld [vmem:[%s2 + $0x1e8] sm:$0xf]
  %v1421 = vld [vmem:[%s2 + $0x1ec] sm:$0xf]
  %v1422 = vld [vmem:[%s2 + $0x1f0] sm:$0xf]
  %v1423 = vld [vmem:[%s2 + $0x1f4] sm:$0xf]
  %v1424 = vld [vmem:[%s2 + $0x1f8] sm:$0xf]
  %v1425 = vld [vmem:[%s2 + $0x1fc] sm:$0xf]
  %v1490 = vunpack.c.l.b16 %v1362
  %v1491 = vunpack.c.l.b16 %v1363
  %v1492 = vunpack.c.l.b16 %v1364
  %v1493 = vunpack.c.l.b16 %v1365
  %v1494 = vunpack.c.l.b16 %v1366
  %v1495 = vunpack.c.l.b16 %v1367
  %v1496 = vunpack.c.l.b16 %v1368
  %v1497 = vunpack.c.l.b16 %v1369
  %v1498 = vunpack.c.l.b16 %v1370
  %v1499 = vunpack.c.l.b16 %v1371
  %v1500 = vunpack.c.l.b16 %v1372
  %v1501 = vunpack.c.l.b16 %v1373
  %v1502 = vunpack.c.l.b16 %v1374
  %v1503 = vunpack.c.l.b16 %v1375
  %v1504 = vunpack.c.l.b16 %v1376
  %v1505 = vunpack.c.l.b16 %v1377
  %v1506 = vunpack.c.l.b16 %v1378
  %v1507 = vunpack.c.l.b16 %v1379
  %v1508 = vunpack.c.l.b16 %v1380
  %v1509 = vunpack.c.l.b16 %v1381
  %v1510 = vunpack.c.l.b16 %v1382
  %v1511 = vunpack.c.l.b16 %v1383
  %v1512 = vunpack.c.l.b16 %v1384
  %v1513 = vunpack.c.l.b16 %v1385
  %v1514 = vunpack.c.l.b16 %v1386
  %v1515 = vunpack.c.l.b16 %v1387
  %v1516 = vunpack.c.l.b16 %v1388
  %v1517 = vunpack.c.l.b16 %v1389
  %v1518 = vunpack.c.l.b16 %v1390
  %v1519 = vunpack.c.l.b16 %v1391
  %v1520 = vunpack.c.l.b16 %v1392
  %v1521 = vunpack.c.l.b16 %v1393
  %v1522 = vunpack.c.l.b16 %v1394
  %v1523 = vunpack.c.l.b16 %v1395
  %v1524 = vunpack.c.l.b16 %v1396
  %v1525 = vunpack.c.l.b16 %v1397
  %v1526 = vunpack.c.l.b16 %v1398
  %v1527 = vunpack.c.l.b16 %v1399
  %v1528 = vunpack.c.l.b16 %v1400
  %v1529 = vunpack.c.l.b16 %v1401
  %v1530 = vunpack.c.l.b16 %v1402
  %v1531 = vunpack.c.l.b16 %v1403
  %v1532 = vunpack.c.l.b16 %v1404
  %v1533 = vunpack.c.l.b16 %v1405
  %v1534 = vunpack.c.l.b16 %v1406
  %v1535 = vunpack.c.l.b16 %v1407
  %v1536 = vunpack.c.l.b16 %v1408
  %v1537 = vunpack.c.l.b16 %v1409
  %v1538 = vunpack.c.l.b16 %v1410
  %v1539 = vunpack.c.l.b16 %v1411
  %v1540 = vunpack.c.l.b16 %v1412
  %v1541 = vunpack.c.l.b16 %v1413
  %v1542 = vunpack.c.l.b16 %v1414
  %v1543 = vunpack.c.l.b16 %v1415
  %v1544 = vunpack.c.l.b16 %v1416
  %v1545 = vunpack.c.l.b16 %v1417
  %v1546 = vunpack.c.l.b16 %v1418
  %v1547 = vunpack.c.l.b16 %v1419
  %v1548 = vunpack.c.l.b16 %v1420
  %v1549 = vunpack.c.l.b16 %v1421
  %v1550 = vunpack.c.l.b16 %v1422
  %v1551 = vunpack.c.l.b16 %v1423
  %v1552 = vunpack.c.l.b16 %v1424
  %v1553 = vunpack.c.l.b16 %v1425
  %v1554 = vpack.c.b16 %v1491, %v1490
  %v1555 = vpack.c.b16 %v1493, %v1492
  %v1556 = vpack.c.b16 %v1495, %v1494
  %v1557 = vpack.c.b16 %v1497, %v1496
  %v1558 = vpack.c.b16 %v1499, %v1498
  %v1559 = vpack.c.b16 %v1501, %v1500
  %v1560 = vpack.c.b16 %v1503, %v1502
  %v1561 = vpack.c.b16 %v1505, %v1504
  %v1562 = vpack.c.b16 %v1507, %v1506
  %v1563 = vpack.c.b16 %v1509, %v1508
  %v1564 = vpack.c.b16 %v1511, %v1510
  %v1565 = vpack.c.b16 %v1513, %v1512
  %v1566 = vpack.c.b16 %v1515, %v1514
  %v1567 = vpack.c.b16 %v1517, %v1516
  %v1568 = vpack.c.b16 %v1519, %v1518
  %v1569 = vpack.c.b16 %v1521, %v1520
  %v1570 = vpack.c.b16 %v1523, %v1522
  %v1571 = vpack.c.b16 %v1525, %v1524
  %v1572 = vpack.c.b16 %v1527, %v1526
  %v1573 = vpack.c.b16 %v1529, %v1528
  %v1574 = vpack.c.b16 %v1531, %v1530
  %v1575 = vpack.c.b16 %v1533, %v1532
  %v1576 = vpack.c.b16 %v1535, %v1534
  %v1577 = vpack.c.b16 %v1537, %v1536
  %v1578 = vpack.c.b16 %v1539, %v1538
  %v1579 = vpack.c.b16 %v1541, %v1540
  %v1580 = vpack.c.b16 %v1543, %v1542
  %v1581 = vpack.c.b16 %v1545, %v1544
  %v1582 = vpack.c.b16 %v1547, %v1546
  %v1583 = vpack.c.b16 %v1549, %v1548
  %v1584 = vpack.c.b16 %v1551, %v1550
  %v1585 = vpack.c.b16 %v1553, %v1552
  %1618 = vmatprep.subr.bf16.mxu0 0
  %1619 = vmatpush1.bf16.msra.mxu0 %v1554
  %1620 = vmatprep.subr.bf16.mxu0 0
  %1621 = vmatpush1.bf16.msra.mxu0 %v1555
  %1622 = vmatprep.subr.bf16.mxu0 0
  %1623 = vmatpush1.bf16.msra.mxu0 %v1556
  %1624 = vmatprep.subr.bf16.mxu0 0
  %1625 = vmatpush1.bf16.msra.mxu0 %v1557
  %1626 = vmatprep.subr.bf16.mxu0 0
  %1627 = vmatpush1.bf16.msra.mxu0 %v1558
  %1628 = vmatprep.subr.bf16.mxu0 0
  %1629 = vmatpush1.bf16.msra.mxu0 %v1559
  %1630 = vmatprep.subr.bf16.mxu0 0
  %1631 = vmatpush1.bf16.msra.mxu0 %v1560
  %1632 = vmatprep.subr.bf16.mxu0 0
  %1633 = vmatpush1.bf16.msra.mxu0 %v1561
  %1634 = vmatprep.subr.bf16.mxu0 0
  %1635 = vmatpush1.bf16.msra.mxu0 %v1562
  %1636 = vmatprep.subr.bf16.mxu0 0
  %1637 = vmatpush1.bf16.msra.mxu0 %v1563
  %1638 = vmatprep.subr.bf16.mxu0 0
  %1639 = vmatpush1.bf16.msra.mxu0 %v1564
  %1640 = vmatprep.subr.bf16.mxu0 0
  %1641 = vmatpush1.bf16.msra.mxu0 %v1565
  %1642 = vmatprep.subr.bf16.mxu0 0
  %1643 = vmatpush1.bf16.msra.mxu0 %v1566
  %1644 = vmatprep.subr.bf16.mxu0 0
  %1645 = vmatpush1.bf16.msra.mxu0 %v1567
  %1646 = vmatprep.subr.bf16.mxu0 0
  %1647 = vmatpush1.bf16.msra.mxu0 %v1568
  %1648 = vmatprep.subr.bf16.mxu0 0
  %1649 = vmatpush1.bf16.msra.mxu0 %v1569
  %1650 = vmatprep.mubr.bf16.mxu0 %v1359
  %1651 = vmatmul.mubr.bf16.gmra.mrb[0].mxu0 %v1358
  %v1652 = vpop.f32.mrb[0].mxu0
  %v1653 = vadd.f32 0.0, %v1652
  %v1654 = vpop.f32.mrb[0].mxu0
  %v1655 = vpop.f32.mrb[0].mxu0
  %v1656 = vpop.f32.mrb[0].mxu0
  %1657 = vdwg.mxu0
  %1658 = vmatprep.subr.bf16.mxu0 0
  %1659 = vmatpush1.bf16.msra.mxu0 %v1570
  %1660 = vmatprep.subr.bf16.mxu0 0
  %1661 = vmatpush1.bf16.msra.mxu0 %v1571
  %1662 = vmatprep.subr.bf16.mxu0 0
  %1663 = vmatpush1.bf16.msra.mxu0 %v1572
  %1664 = vmatprep.subr.bf16.mxu0 0
  %1665 = vmatpush1.bf16.msra.mxu0 %v1573
  %1666 = vmatprep.subr.bf16.mxu0 0
  %1667 = vmatpush1.bf16.msra.mxu0 %v1574
  %1668 = vmatprep.subr.bf16.mxu0 0
  %1669 = vmatpush1.bf16.msra.mxu0 %v1575
  %1670 = vmatprep.subr.bf16.mxu0 0
  %1671 = vmatpush1.bf16.msra.mxu0 %v1576
  %1672 = vmatprep.subr.bf16.mxu0 0
  %1673 = vmatpush1.bf16.msra.mxu0 %v1577
  %1674 = vmatprep.subr.bf16.mxu0 0
  %1675 = vmatpush1.bf16.msra.mxu0 %v1578
  %1676 = vmatprep.subr.bf16.mxu0 0
  %1677 = vmatpush1.bf16.msra.mxu0 %v1579
  %1678 = vmatprep.subr.bf16.mxu0 0
  %1679 = vmatpush1.bf16.msra.mxu0 %v1580
  %1680 = vmatprep.subr.bf16.mxu0 0
  %1681 = vmatpush1.bf16.msra.mxu0 %v1581
  %1682 = vmatprep.subr.bf16.mxu0 0
  %1683 = vmatpush1.bf16.msra.mxu0 %v1582
  %1684 = vmatprep.subr.bf16.mxu0 0
  %1685 = vmatpush1.bf16.msra.mxu0 %v1583
  %1686 = vmatprep.subr.bf16.mxu0 0
  %1687 = vmatpush1.bf16.msra.mxu0 %v1584
  %1688 = vmatprep.subr.bf16.mxu0 0
  %1689 = vmatpush1.bf16.msra.mxu0 %v1585
  %1690 = vmatprep.mubr.bf16.mxu0 %v1361
  %1691 = vmatmul.mubr.bf16.gmra.mrb[0].mxu0 %v1360
  %v1692 = vpop.f32.mrb[0].mxu0
  %v1693 = vadd.f32 %v1653, %v1692
  %v1694 = vpop.f32.mrb[0].mxu0
  %v1695 = vpop.f32.mrb[0].mxu0
  %v1696 = vpop.f32.mrb[0].mxu0
  %1697 = vdwg.mxu0
  %v1698 = vadd.f32 %v1349, %v1693
  %v1699 = vld [vmem:[%s4 + $0x50] sm:$0xff]
  %v1701 = vsel %vm89, %v1698, 0
  %1703 = vmatprep.subr.mxu0 0.0
  %1704 = vmatpush1.msra.mxu0 %v1117
  %1705 = vmatprep.subr.mxu0 0.0
  %1706 = vmatpush1.msra.mxu0 %v1120
  %1707 = vmatprep.subr.mxu0 0.0
  %1708 = vmatpush1.msra.mxu0 %v1125
  %1709 = vmatprep.subr.mxu0 0.0
  %1710 = vmatpush1.msra.mxu0 %v1128
  %1711 = vmatprep.subr.mxu0 0.0
  %1712 = vmatpush1.msra.mxu0 %v1133
  %1713 = vmatprep.subr.mxu0 0.0
  %1714 = vmatpush1.msra.mxu0 %v1136
  %1715 = vmatprep.subr.mxu0 0.0
  %1716 = vmatpush1.msra.mxu0 %v1141
  %1717 = vmatprep.subr.mxu0 0.0
  %1718 = vmatpush1.msra.mxu0 %v1144
  %1719 = vmatprep.subr.mxu0 0.0
  %1720 = vmatpush1.msra.mxu0 0.0
  %1721 = vmatprep.subr.mxu0 0.0
  %1722 = vmatpush1.msra.mxu0 0.0
  %1723 = vmatprep.subr.mxu0 0.0
  %1724 = vmatpush1.msra.mxu0 0.0
  %1725 = vmatprep.subr.mxu0 0.0
  %1726 = vmatpush1.msra.mxu0 0.0
  %1727 = vmatprep.subr.mxu0 0.0
  %1728 = vmatpush1.msra.mxu0 0.0
  %1729 = vmatprep.subr.mxu0 0.0
  %1730 = vmatpush1.msra.mxu0 0.0
  %1731 = vmatprep.subr.mxu0 0.0
  %1732 = vmatpush1.msra.mxu0 0.0
  %1733 = vmatprep.subr.mxu0 0.0
  %1734 = vmatpush1.msra.mxu0 0.0
  %1735 = vmatprep.subr.mxu0 0.0
  %1736 = vmatpush1.msra.mxu0 0.0
  %1737 = vmatprep.subr.mxu0 0.0
  %1738 = vmatpush1.msra.mxu0 0.0
  %1739 = vmatprep.subr.mxu0 0.0
  %1740 = vmatpush1.msra.mxu0 0.0
  %1741 = vmatprep.subr.mxu0 0.0
  %1742 = vmatpush1.msra.mxu0 0.0
  %1743 = vmatprep.subr.mxu0 0.0
  %1744 = vmatpush1.msra.mxu0 0.0
  %1745 = vmatprep.subr.mxu0 0.0
  %1746 = vmatpush1.msra.mxu0 0.0
  %1747 = vmatprep.subr.mxu0 0.0
  %1748 = vmatpush1.msra.mxu0 0.0
  %1749 = vmatprep.subr.mxu0 0.0
  %1750 = vmatpush1.msra.mxu0 0.0
  %1751 = vmatprep.subr.mxu0 0.0
  %1752 = vmatpush1.msra.mxu0 0.0
  %1753 = vmatprep.subr.mxu0 0.0
  %1754 = vmatpush1.msra.mxu0 0.0
  %1755 = vmatprep.subr.mxu0 0.0
  %1756 = vmatpush1.msra.mxu0 0.0
  %1757 = vmatprep.subr.mxu0 0.0
  %1758 = vmatpush1.msra.mxu0 0.0
  %1759 = vmatprep.subr.mxu0 0.0
  %1760 = vmatpush1.msra.mxu0 0.0
  %1761 = vmatprep.subr.mxu0 0.0
  %1762 = vmatpush1.msra.mxu0 0.0
  %1763 = vmatprep.subr.mxu0 0.0
  %1764 = vmatpush1.msra.mxu0 0.0
  %1765 = vmatprep.subr.mxu0 0.0
  %1766 = vmatpush1.msra.mxu0 0.0
  %1767 = vmatprep.mubr.f32.mxu0 0.0
  %1768 = vmatmul.mubr.f32.gmra.mrb[0].mxu0 %v1701
  %v1769 = vpop.f32.mrb[0].mxu0
  %v1770 = vadd.f32 %v1699, %v1769
  %v1771 = vpop.f32.mrb[0].mxu0
  %1772 = vdwg.mxu0
  %v1773 = vadd.f32 %v1770, %v930
  %v1774 = vld [vmem:[%s4 + $0x70] sm:$0xff]
  %v1775 = vld [vmem:[%s4 + $0x78] sm:$0xff]
  %v1776 = vsel %vm89, %v1773, 0.0
  %1777 = vadd.xlane.f32.xlu0 %v1776
  %v1778 = vpop.xlane.xlu0 %1777
  %v1779 = vmul.f32 %v1778, 0.015625
  %v1780 = vsub.f32 %v1773, %v1779
  %v1781 = vmul.f32 %v1780, %v1780
  %v1782 = vsel %vm89, %v1781, 0.0
  %1783 = vadd.xlane.f32.xlu0 %v1782
  %v1784 = vpop.xlane.xlu0 %1783
  %v1785 = vmul.f32 %v1784, 0.015625
  %v1786 = vadd.f32 %v1785, 1e-05
  %v1787 = vrsqrt.pop %v1786
  %v1788 = vmul.f32 %v1780, %v1787
  %v1789 = vmul.f32 %v1788, %v1774
  %v1790 = vadd.f32 %v1789, %v1775
  %v1791 = vpack.c.bf16 %v1790, %v1790
  %v1792 = vld [vmem:[%s1 + $0x80] sm:$0xff]
  %v1793 = vld [vmem:[%s1 + $0x88] sm:$0xff]
  %v1794 = vld [vmem:[%s1 + $0x90] sm:$0xff]
  %v1795 = vld [vmem:[%s1 + $0x98] sm:$0xff]
  %v1796 = vld [vmem:[%s1 + $0xa0] sm:$0xff]
  %v1797 = vld [vmem:[%s1 + $0xa8] sm:$0xff]
  %v1798 = vld [vmem:[%s1 + $0xb0] sm:$0xff]
  %v1799 = vld [vmem:[%s1 + $0xb8] sm:$0xff]
  %v1800 = vld [vmem:[%s3 + $0x20] sm:$0xff]
  %v1801 = vld [vmem:[%s3 + $0x28] sm:$0xff]
  %v1810 = vunpack.c.l.b16 %v1792
  %v1811 = vunpack.c.h.b16 %v1792
  %v1812 = vunpack.c.l.b16 %v1793
  %v1813 = vunpack.c.h.b16 %v1793
  %v1814 = vunpack.c.l.b16 %v1794
  %v1815 = vunpack.c.h.b16 %v1794
  %v1816 = vunpack.c.l.b16 %v1795
  %v1817 = vunpack.c.h.b16 %v1795
  %v1818 = vunpack.c.l.b16 %v1796
  %v1819 = vunpack.c.h.b16 %v1796
  %v1820 = vunpack.c.l.b16 %v1797
  %v1821 = vunpack.c.h.b16 %v1797
  %v1822 = vunpack.c.l.b16 %v1798
  %v1823 = vunpack.c.h.b16 %v1798
  %v1824 = vunpack.c.l.b16 %v1799
  %v1825 = vunpack.c.h.b16 %v1799
  %v1826 = vpack.c.b16 %v1812, %v1810
  %v1827 = vpack.c.b16 %v1813, %v1811
  %v1828 = vpack.c.b16 %v1816, %v1814
  %v1829 = vpack.c.b16 %v1817, %v1815
  %v1830 = vpack.c.b16 %v1820, %v1818
  %v1831 = vpack.c.b16 %v1821, %v1819
  %v1832 = vpack.c.b16 %v1824, %v1822
  %v1833 = vpack.c.b16 %v1825, %v1823
  %v1843 = vsel %vm89, %v1791, 0
  %1845 = vmatprep.subr.bf16.mxu0 %v1827
  %1846 = vmatpush1.bf16.msra.mxu0 %v1826
  %1847 = vmatprep.subr.bf16.mxu0 %v1829
  %1848 = vmatpush1.bf16.msra.mxu0 %v1828
  %1849 = vmatprep.subr.bf16.mxu0 %v1831
  %1850 = vmatpush1.bf16.msra.mxu0 %v1830
  %1851 = vmatprep.subr.bf16.mxu0 %v1833
  %1852 = vmatpush1.bf16.msra.mxu0 %v1832
  %1853 = vmatprep.subr.bf16.mxu0 0
  %1854 = vmatpush1.bf16.msra.mxu0 0
  %1855 = vmatprep.subr.bf16.mxu0 0
  %1856 = vmatpush1.bf16.msra.mxu0 0
  %1857 = vmatprep.subr.bf16.mxu0 0
  %1858 = vmatpush1.bf16.msra.mxu0 0
  %1859 = vmatprep.subr.bf16.mxu0 0
  %1860 = vmatpush1.bf16.msra.mxu0 0
  %1861 = vmatprep.subr.bf16.mxu0 0
  %1862 = vmatpush1.bf16.msra.mxu0 0
  %1863 = vmatprep.subr.bf16.mxu0 0
  %1864 = vmatpush1.bf16.msra.mxu0 0
  %1865 = vmatprep.subr.bf16.mxu0 0
  %1866 = vmatpush1.bf16.msra.mxu0 0
  %1867 = vmatprep.subr.bf16.mxu0 0
  %1868 = vmatpush1.bf16.msra.mxu0 0
  %1869 = vmatprep.subr.bf16.mxu0 0
  %1870 = vmatpush1.bf16.msra.mxu0 0
  %1871 = vmatprep.subr.bf16.mxu0 0
  %1872 = vmatpush1.bf16.msra.mxu0 0
  %1873 = vmatprep.subr.bf16.mxu0 0
  %1874 = vmatpush1.bf16.msra.mxu0 0
  %1875 = vmatprep.subr.bf16.mxu0 0
  %1876 = vmatpush1.bf16.msra.mxu0 0
  %1877 = vmatprep.mubr.bf16.mxu0 0
  %1878 = vmatmul.mubr.bf16.gmra.mrb[0].mxu0 %v1843
  %v1879 = vpop.f32.mrb[0].mxu0
  %v1880 = vadd.f32 %v1800, %v1879
  %v1881 = vpop.f32.mrb[0].mxu0
  %v1882 = vadd.f32 %v1801, %v1881
  %v1883 = vpop.f32.mrb[0].mxu0
  %v1884 = vpop.f32.mrb[0].mxu0
  %1885 = vdwg.mxu0
  %vm1886 = vcmp.gt.f32.partialorder %v1880, 0.0
  %vm1887 = vcmp.gt.f32.partialorder %v1882, 0.0
  %v1888 = vmul.f32 %v1880, 0.01
  %v1889 = vmul.f32 %v1882, 0.01
  %v1890 = vsel %vm1886, %v1880, %v1888
  %v1891 = vsel %vm1887, %v1882, %v1889
  %v1892 = vpack.c.bf16 %v1890, %v1890
  %v1893 = vpack.c.bf16 %v1891, %v1891
  %v1894 = vld [vmem:[%s2 + $0x200] sm:$0xf]
  %v1895 = vld [vmem:[%s2 + $0x204] sm:$0xf]
  %v1896 = vld [vmem:[%s2 + $0x208] sm:$0xf]
  %v1897 = vld [vmem:[%s2 + $0x20c] sm:$0xf]
  %v1898 = vld [vmem:[%s2 + $0x210] sm:$0xf]
  %v1899 = vld [vmem:[%s2 + $0x214] sm:$0xf]
  %v1900 = vld [vmem:[%s2 + $0x218] sm:$0xf]
  %v1901 = vld [vmem:[%s2 + $0x21c] sm:$0xf]
  %v1902 = vld [vmem:[%s2 + $0x220] sm:$0xf]
  %v1903 = vld [vmem:[%s2 + $0x224] sm:$0xf]
  %v1904 = vld [vmem:[%s2 + $0x228] sm:$0xf]
  %v1905 = vld [vmem:[%s2 + $0x22c] sm:$0xf]
  %v1906 = vld [vmem:[%s2 + $0x230] sm:$0xf]
  %v1907 = vld [vmem:[%s2 + $0x234] sm:$0xf]
  %v1908 = vld [vmem:[%s2 + $0x238] sm:$0xf]
  %v1909 = vld [vmem:[%s2 + $0x23c] sm:$0xf]
  %v1910 = vld [vmem:[%s2 + $0x240] sm:$0xf]
  %v1911 = vld [vmem:[%s2 + $0x244] sm:$0xf]
  %v1912 = vld [vmem:[%s2 + $0x248] sm:$0xf]
  %v1913 = vld [vmem:[%s2 + $0x24c] sm:$0xf]
  %v1914 = vld [vmem:[%s2 + $0x250] sm:$0xf]
  %v1915 = vld [vmem:[%s2 + $0x254] sm:$0xf]
  %v1916 = vld [vmem:[%s2 + $0x258] sm:$0xf]
  %v1917 = vld [vmem:[%s2 + $0x25c] sm:$0xf]
  %v1918 = vld [vmem:[%s2 + $0x260] sm:$0xf]
  %v1919 = vld [vmem:[%s2 + $0x264] sm:$0xf]
  %v1920 = vld [vmem:[%s2 + $0x268] sm:$0xf]
  %v1921 = vld [vmem:[%s2 + $0x26c] sm:$0xf]
  %v1922 = vld [vmem:[%s2 + $0x270] sm:$0xf]
  %v1923 = vld [vmem:[%s2 + $0x274] sm:$0xf]
  %v1924 = vld [vmem:[%s2 + $0x278] sm:$0xf]
  %v1925 = vld [vmem:[%s2 + $0x27c] sm:$0xf]
  %v1926 = vld [vmem:[%s4 + $0x58] sm:$0xff]
  %v1959 = vunpack.c.l.b16 %v1894
  %v1960 = vunpack.c.l.b16 %v1895
  %v1961 = vunpack.c.l.b16 %v1896
  %v1962 = vunpack.c.l.b16 %v1897
  %v1963 = vunpack.c.l.b16 %v1898
  %v1964 = vunpack.c.l.b16 %v1899
  %v1965 = vunpack.c.l.b16 %v1900
  %v1966 = vunpack.c.l.b16 %v1901
  %v1967 = vunpack.c.l.b16 %v1902
  %v1968 = vunpack.c.l.b16 %v1903
  %v1969 = vunpack.c.l.b16 %v1904
  %v1970 = vunpack.c.l.b16 %v1905
  %v1971 = vunpack.c.l.b16 %v1906
  %v1972 = vunpack.c.l.b16 %v1907
  %v1973 = vunpack.c.l.b16 %v1908
  %v1974 = vunpack.c.l.b16 %v1909
  %v1975 = vunpack.c.l.b16 %v1910
  %v1976 = vunpack.c.l.b16 %v1911
  %v1977 = vunpack.c.l.b16 %v1912
  %v1978 = vunpack.c.l.b16 %v1913
  %v1979 = vunpack.c.l.b16 %v1914
  %v1980 = vunpack.c.l.b16 %v1915
  %v1981 = vunpack.c.l.b16 %v1916
  %v1982 = vunpack.c.l.b16 %v1917
  %v1983 = vunpack.c.l.b16 %v1918
  %v1984 = vunpack.c.l.b16 %v1919
  %v1985 = vunpack.c.l.b16 %v1920
  %v1986 = vunpack.c.l.b16 %v1921
  %v1987 = vunpack.c.l.b16 %v1922
  %v1988 = vunpack.c.l.b16 %v1923
  %v1989 = vunpack.c.l.b16 %v1924
  %v1990 = vunpack.c.l.b16 %v1925
  %v1991 = vpack.c.b16 %v1960, %v1959
  %v1992 = vpack.c.b16 %v1962, %v1961
  %v1993 = vpack.c.b16 %v1964, %v1963
  %v1994 = vpack.c.b16 %v1966, %v1965
  %v1995 = vpack.c.b16 %v1968, %v1967
  %v1996 = vpack.c.b16 %v1970, %v1969
  %v1997 = vpack.c.b16 %v1972, %v1971
  %v1998 = vpack.c.b16 %v1974, %v1973
  %v1999 = vpack.c.b16 %v1976, %v1975
  %v2000 = vpack.c.b16 %v1978, %v1977
  %v2001 = vpack.c.b16 %v1980, %v1979
  %v2002 = vpack.c.b16 %v1982, %v1981
  %v2003 = vpack.c.b16 %v1984, %v1983
  %v2004 = vpack.c.b16 %v1986, %v1985
  %v2005 = vpack.c.b16 %v1988, %v1987
  %v2006 = vpack.c.b16 %v1990, %v1989
  %2023 = vmatprep.subr.bf16.mxu0 0
  %2024 = vmatpush1.bf16.msra.mxu0 %v1991
  %2025 = vmatprep.subr.bf16.mxu0 0
  %2026 = vmatpush1.bf16.msra.mxu0 %v1992
  %2027 = vmatprep.subr.bf16.mxu0 0
  %2028 = vmatpush1.bf16.msra.mxu0 %v1993
  %2029 = vmatprep.subr.bf16.mxu0 0
  %2030 = vmatpush1.bf16.msra.mxu0 %v1994
  %2031 = vmatprep.subr.bf16.mxu0 0
  %2032 = vmatpush1.bf16.msra.mxu0 %v1995
  %2033 = vmatprep.subr.bf16.mxu0 0
  %2034 = vmatpush1.bf16.msra.mxu0 %v1996
  %2035 = vmatprep.subr.bf16.mxu0 0
  %2036 = vmatpush1.bf16.msra.mxu0 %v1997
  %2037 = vmatprep.subr.bf16.mxu0 0
  %2038 = vmatpush1.bf16.msra.mxu0 %v1998
  %2039 = vmatprep.subr.bf16.mxu0 0
  %2040 = vmatpush1.bf16.msra.mxu0 %v1999
  %2041 = vmatprep.subr.bf16.mxu0 0
  %2042 = vmatpush1.bf16.msra.mxu0 %v2000
  %2043 = vmatprep.subr.bf16.mxu0 0
  %2044 = vmatpush1.bf16.msra.mxu0 %v2001
  %2045 = vmatprep.subr.bf16.mxu0 0
  %2046 = vmatpush1.bf16.msra.mxu0 %v2002
  %2047 = vmatprep.subr.bf16.mxu0 0
  %2048 = vmatpush1.bf16.msra.mxu0 %v2003
  %2049 = vmatprep.subr.bf16.mxu0 0
  %2050 = vmatpush1.bf16.msra.mxu0 %v2004
  %2051 = vmatprep.subr.bf16.mxu0 0
  %2052 = vmatpush1.bf16.msra.mxu0 %v2005
  %2053 = vmatprep.subr.bf16.mxu0 0
  %2054 = vmatpush1.bf16.msra.mxu0 %v2006
  %2055 = vmatprep.mubr.bf16.mxu0 %v1893
  %2056 = vmatmul.mubr.bf16.gmra.mrb[0].mxu0 %v1892
  %v2057 = vpop.f32.mrb[0].mxu0
  %v2058 = vadd.f32 %v1926, %v2057
  %v2059 = vpop.f32.mrb[0].mxu0
  %v2060 = vpop.f32.mrb[0].mxu0
  %v2061 = vpop.f32.mrb[0].mxu0
  %2062 = vdwg.mxu0
  %v2063 = vadd.f32 %v2058, %v1790
  %v2064 = vld [vmem:[%s4 + $0x80] sm:$0xff]
  %v2065 = vld [vmem:[%s4 + $0x88] sm:$0xff]
  %v2066 = vsel %vm89, %v2063, 0.0
  %2067 = vadd.xlane.f32.xlu0 %v2066
  %v2068 = vpop.xlane.xlu0 %2067
  %v2069 = vmul.f32 %v2068, 0.015625
  %v2070 = vsub.f32 %v2063, %v2069
  %v2071 = vmul.f32 %v2070, %v2070
  %v2072 = vsel %vm89, %v2071, 0.0
  %2073 = vadd.xlane.f32.xlu0 %v2072
  %v2074 = vpop.xlane.xlu0 %2073
  %v2075 = vmul.f32 %v2074, 0.015625
  %v2076 = vadd.f32 %v2075, 1e-05
  %v2077 = vrsqrt.pop %v2076
  %v2078 = vmul.f32 %v2070, %v2077
  %v2079 = vmul.f32 %v2078, %v2064
  %v2080 = vadd.f32 %v2079, %v2065
  %2081 = vst.msk [vmem:[%s6] sm:$0xff] %vm89, %v2080
  // Predicated region
  $region26: #{decoder_layer.1} parent=0 // pred_check
    _
  $region27: #{decoder_layer.1} parent=0 // pred_check_branch
    %2083 = sbr.rel (0) target = $region29
  $region28: #{decoder_layer.1} parent=0 // pred_region
    _
  $region29: #{decoder_layer.1} parent=0 // pred_fallthru
    _
  // Predicated region
  $region30: #{decoder_layer.1} parent=0 // pred_check
    _
  $region31: #{decoder_layer.1} parent=0 // pred_check_branch
    %2085 = sbr.rel (0) target = $region33
  $region32: #{decoder_layer.1} parent=0 // pred_region
    _
  $region33: #{decoder_layer.1} parent=0 // pred_fallthru
    _

</llo_original>
